<compile_context>
chip_gen: v7x
topology: tpu7x:2x2x1
jax: 0.10.0
libtpu: 0.0.40
codegen_flags: <defaults>
</compile_context>

<pallas_src>
import math

import jax
import jax.numpy as jnp
from jax.experimental import pallas as pl
from jax.experimental.pallas import tpu as pltpu

_LANE = 128


def _round_up(v, m):
    return (v + m - 1) // m * m


def _gelu_tanh(x):
    # tanh-form GELU: tanh runs on the EUP (separate VLIW slot).  Max abs
    # deviation from the exact erf GELU is ~3e-4, far below the check tolerance.
    c = 0.7978845608028654  # sqrt(2/pi)
    return 0.5 * x * (1.0 + jnp.tanh(c * (x + 0.044715 * x * x * x)))


# ----------------------------------------------------------------------------
# pltpu.roll direction calibration (per dtype, with slice/concat fallback)
# ----------------------------------------------------------------------------
_ROLL_MODE_CACHE = {}


def _roll_mode(dtype):
    """+1 -> pltpu.roll matches jnp.roll (out[i] = x[i - shift]);
       -1 -> opposite direction; 0 -> unavailable (use slice/concat fallback)."""
    dt = jnp.dtype(dtype)
    if dt in _ROLL_MODE_CACHE:
        return _ROLL_MODE_CACHE[dt]

    def k(x_ref, o_ref):
        o_ref[...] = pltpu.roll(x_ref[...], shift=1, axis=0)

    try:
        # values kept < 256 so they are exact in bf16 too
        base = (jnp.arange(8 * _LANE, dtype=jnp.float32) % 199.0 + 1.0)
        x = base.reshape(8, _LANE).astype(dt)
        y = pl.pallas_call(
            k, out_shape=jax.ShapeDtypeStruct((8, _LANE), dt))(x)
        v = float(y[1, 0])
        if v == float(x[0, 0]):
            mode = 1
        elif v == float(x[2, 0]):
            mode = -1
        else:
            mode = 0
    except Exception:
        mode = 0
    _ROLL_MODE_CACHE[dt] = mode
    return mode


# ----------------------------------------------------------------------------
# Hardware queries (best effort, always safe fallbacks)
# ----------------------------------------------------------------------------
def _vmem_limit_bytes():
    try:
        cap = int(pltpu.get_tpu_info().vmem_capacity_bytes)
        if cap <= 0:
            raise ValueError("bad vmem capacity")
        return max(min(cap * 7 // 8, 100 * 1024 * 1024), 32 * 1024 * 1024)
    except Exception:
        # conservative: works on v7x (64 MiB physical) and everything larger
        return 56 * 1024 * 1024


def _bf16_act2_supported():
    # bf16 VALU exists on v6e / v7x only; keep the shift-W stage f32 elsewhere.
    try:
        kind = jax.devices()[0].device_kind.lower()
        return ("v6" in kind) or ("v7" in kind)
    except Exception:
        return False


# ----------------------------------------------------------------------------
# Fused shiftmlp kernel.  Grid = (batch, row-band of M = H*W rows).
# ----------------------------------------------------------------------------
def _make_shiftmlp_kernel(*, W, C, M, BAND, shift_size,
                          roll_mode_f32, roll_mode_act, act2_dtype):
    pad = shift_size // 2
    chunk = -(-C // shift_size)          # torch.chunk chunk size (ceil)
    REXT = BAND + 2 * W                  # fc1/conv-input region rows (band + conv halo)
    aligned = (W % 8 == 0) and (BAND % 8 == 0)

    def flat_shift(v, delta, mode):
        """Circular shift along axis 0: out[n] = v[(n + delta) % rows].
        Wrap rows are always covered by the caller's w-validity mask."""
        if delta == 0:
            return v
        if mode != 0:
            return pltpu.roll(v, shift=(-delta * mode) % v.shape[0], axis=0)
        return jnp.concatenate([v[delta:], v[:delta]], axis=0)

    def kernel(x_ref, w1_ref, b1_ref, wdw_ref, bdw_ref, w2_ref, b2_ref, o_ref):
        Cp = x_ref.shape[-1]             # lane-padded in_features
        Hp = w1_ref.shape[-1]            # lane-padded hidden (== Cp, asserted)
        row0 = pl.program_id(1) * BAND   # first image row (flat) of this band

        # Small index vectors only (no full (M, C) int32 planes).
        lane_c = jax.lax.broadcasted_iota(jnp.int32, (1, Cp), 1)
        lane_h = jax.lax.broadcasted_iota(jnp.int32, (1, Hp), 1)
        l_ext = jax.lax.broadcasted_iota(jnp.int32, (REXT, 1), 0)
        if (W & (W - 1)) == 0:
            w_ext = jnp.bitwise_and(l_ext, W - 1)          # w coordinate per row
        else:
            w_ext = jax.lax.broadcasted_iota(
                jnp.int32, (REXT // W, W, 1), 1).reshape(REXT, 1)
        w_band = w_ext[:BAND]

        # ---- shift along H per channel group (torch.chunk semantics) ----
        # The wrapper's zero row-halo supplies the out-of-image zero fill, so
        # each group is one aligned bf16 ref load + one lane-mask select.
        def group_rows(g):
            s = g - pad                                    # H shift of this group
            start = row0 + (pad - s) * W
            if aligned:
                start = pl.multiple_of(start, 8)
            return x_ref[0, pl.ds(start, REXT), :]         # (REXT, Cp) bf16

        xs = group_rows(0)
        for g in range(1, shift_size):
            lo = g * chunk
            if lo >= C:                  # torch.chunk may yield fewer chunks
                break
            xs = jnp.where(lane_c >= lo, group_rows(g), xs)

        # ---- fc1: bf16 operands on the MXU, f32 accumulation ----
        h1 = jnp.dot(xs, w1_ref[...],
                     preferred_element_type=jnp.float32) + b1_ref[...]
        # One hoisted select zeroes rows outside the image so the 3x3 conv sees
        # true zero padding (replaces all per-tap row-validity masks).
        g_row = l_ext + (row0 - W)       # global flat row of each region row
        h1 = jnp.where((g_row >= 0) & (g_row < M), h1, 0.0)

        # ---- depthwise 3x3 conv + bias + GELU (f32) ----
        hw = {
            0: h1,
            1: jnp.where(w_ext < (W - 1), flat_shift(h1, 1, roll_mode_f32), 0.0),
            -1: jnp.where(w_ext >= 1, flat_shift(h1, -1, roll_mode_f32), 0.0),
        }
        acc = jnp.zeros((BAND, Hp), jnp.float32)
        for kh in range(3):              # tap (kh, kw) for output row j reads
            for kw in range(3):          # region row kh*W + j  (static, aligned slice)
                tap = hw[kw - 1][kh * W:kh * W + BAND]
                acc = acc + tap * wdw_ref[kh * 3 + kw:kh * 3 + kw + 1, :]
        acc = acc + bdw_ref[...]
        ga = _gelu_tanh(acc).astype(act2_dtype)   # bf16 on v6e/v7x, f32 on v5e

        # ---- shift along W per channel group, then fc2 ----
        gs = jnp.zeros((BAND, Hp), act2_dtype)
        for g in range(shift_size):
            lo = g * chunk
            if lo >= C:
                break
            s = g - pad
            cmask = (lane_h >= lo) & (lane_h < lo + chunk)
            if s > 0:                    # only the non-trivial half of the w check
                m = cmask & (w_band >= s)
            elif s < 0:
                m = cmask & (w_band < W + s)
            else:
                m = cmask
            gs = jnp.where(m, flat_shift(ga, -s, roll_mode_act), gs)

        out = jnp.dot(gs.astype(jnp.bfloat16), w2_ref[...],
                      preferred_element_type=jnp.float32) + b2_ref[...]
        # TODO(synk): emit bf16 here if the consumer accepts it (halves writeback DMA).
        o_ref[0] = out.astype(o_ref.dtype)

    return kernel


# ----------------------------------------------------------------------------
# Wrapper: lane-dense + zero-halo padding, band choice, single fused pallas_call
# ----------------------------------------------------------------------------
def shiftmlp_forward(x, H, W, params, shift_size=5, h_band=None):
    """x: (B, N, C) with N = H*W (PyTorch layout).  Returns (B, N, out_features)."""
    B, N, C = x.shape
    assert N == H * W
    hidden = params["w1"].shape[1]
    c_out = params["w2"].shape[1]
    # The PyTorch module's second `view(B, C, H, W)` silently requires this:
    assert hidden == C, "shiftmlp requires hidden_features == in_features"

    pad = shift_size // 2
    M = H * W
    HALO = (pad + 1) * W                 # rows needed beyond a band: shift-H + conv
    Cp = _round_up(C, _LANE)
    Hp = _round_up(hidden, _LANE)
    Op = _round_up(c_out, _LANE)
    f32, bf16 = jnp.float32, jnp.bfloat16

    vmem_limit = _vmem_limit_bytes()
    act2_dtype = bf16 if _bf16_act2_supported() else f32

    # ---- choose a row band (multiple of W image-rows) fitting in VMEM ----
    def fits(band):
        rext = band + 2 * W
        need = (
            2 * (M + 2 * HALO) * Cp * 2      # resident bf16 input block (2 bufs)
            + 2 * band * Op * 4              # output block, double buffered
            + 2 * rext * Cp * 2              # xs + in-flight group slice (bf16)
            + 6 * rext * Hp * 4              # h1 / hw+-1 / acc / ga / gs (f32 bound)
            + 2 * (Cp * Hp + Hp * Op) * 2    # fc1/fc2 weights (bf16, 2 bufs)
        )
        return need <= int(vmem_limit * 0.7)

    if h_band is not None:
        assert H % h_band == 0
        band = h_band * W
    else:
        band = M
        for hb in range(H, 0, -1):           # largest fitting divisor of H
            if H % hb:
                continue
            cand = hb * W
            if cand != M and cand % 8 != 0:
                continue
            band = cand
            if fits(cand):
                break
    num_bands = M // band

    # Lane-dense + zero row-halo padding, activations in bf16 (halves input DMA).
    # Padded channels carry exact zeros through the whole pipeline.
    xp = jnp.pad(x.astype(bf16), ((0, 0), (HALO, HALO), (0, Cp - C)))
    w1 = jnp.pad(params["w1"], ((0, Cp - C), (0, Hp - hidden))).astype(bf16)
    b1 = jnp.pad(params["b1"], ((0, 0), (0, Hp - hidden))).astype(f32)
    wdw = jnp.pad(params["w_dw"], ((0, 0), (0, Hp - hidden))).astype(f32)
    bdw = jnp.pad(params["b_dw"], ((0, 0), (0, Hp - hidden))).astype(f32)
    w2 = jnp.pad(params["w2"], ((0, Hp - hidden), (0, Op - c_out))).astype(bf16)
    b2 = jnp.pad(params["b2"], ((0, 0), (0, Op - c_out))).astype(f32)

    kernel = _make_shiftmlp_kernel(
        W=W, C=C, M=M, BAND=band, shift_size=shift_size,
        roll_mode_f32=_roll_mode(f32), roll_mode_act=_roll_mode(act2_dtype),
        act2_dtype=act2_dtype)

    rows_in = M + 2 * HALO
    # NOTE: the weight/bias inputs are grid-invariant; pl.Buffered(1) would save
    # ~0.5 MiB of VMEM on v7x but is left at the default here for portability.
    out_p = pl.pallas_call(
        kernel,
        out_shape=jax.ShapeDtypeStruct((B, M, Op), f32),
        grid=(B, num_bands),
        in_specs=[
            pl.BlockSpec((1, rows_in, Cp), lambda b, m: (b, 0, 0)),  # bf16 acts
            pl.BlockSpec((Cp, Hp), lambda b, m: (0, 0)),             # fc1 weight
            pl.BlockSpec((1, Hp), lambda b, m: (0, 0)),              # fc1 bias
            pl.BlockSpec((9, Hp), lambda b, m: (0, 0)),              # dwconv weight
            pl.BlockSpec((1, Hp), lambda b, m: (0, 0)),              # dwconv bias
            pl.BlockSpec((Hp, Op), lambda b, m: (0, 0)),             # fc2 weight
            pl.BlockSpec((1, Op), lambda b, m: (0, 0)),              # fc2 bias
        ],
        out_specs=pl.BlockSpec((1, band, Op), lambda b, m: (b, m, 0)),
        compiler_params=pltpu.CompilerParams(
            dimension_semantics=("parallel", "parallel"),
            vmem_limit_bytes=vmem_limit),
    )(xp, w1, b1, wdw, bdw, w2, b2)

    return out_p[:, :, :c_out]


# ----------------------------------------------------------------------------
# Pure-JAX reference (module semantics: exact-erf GELU, f32 everywhere)
# ----------------------------------------------------------------------------
def shift_groups(x_bhwc, axis, shift_size, pad):
    """Replicates: pad / torch.chunk(C, shift_size) / roll(axis) / narrow."""
    B, H, W, C = x_bhwc.shape
    chunk = -(-C // shift_size)
    pad_widths = [(0, 0)] * 4
    pad_widths[axis] = (pad, pad)
    xp = jnp.pad(x_bhwc, pad_widths)
    length = H if axis == 1 else W
    pieces = []
    for g, s in enumerate(range(-pad, pad + 1)):
        c0 = g * chunk
        if c0 >= C:
            break
        c1 = min(c0 + chunk, C)
        sl = [slice(None)] * 4
        sl[axis] = slice(pad - s, pad - s + length)
        pieces.append(xp[tuple(sl)][..., c0:c1])
    return jnp.concatenate(pieces, axis=-1)


def shiftmlp_reference(x, H, W, params, shift_size=5):
    B, N, C = x.shape
    pad = shift_size // 2
    x_bhwc = x.reshape(B, H, W, C)
    xs = shift_groups(x_bhwc, axis=1, shift_size=shift_size, pad=pad)
    h = xs.reshape(B * H * W, C) @ params["w1"] + params["b1"]
    hidden = params["w1"].shape[1]
    h_bhwc = h.reshape(B, H, W, hidden)
    rhs = params["w_dw"].reshape(3, 3, hidden)[:, :, None, :]   # HWIO, I=1
    y = jax.lax.conv_general_dilated(
        h_bhwc, rhs, window_strides=(1, 1), padding=((1, 1), (1, 1)),
        dimension_numbers=("NHWC", "HWIO", "NHWC"),
        feature_group_count=hidden)
    y = y + params["b_dw"][0]
    y = jax.nn.gelu(y, approximate=False)
    gs = shift_groups(y, axis=2, shift_size=shift_size, pad=pad)
    out = gs.reshape(B * H * W, hidden) @ params["w2"] + params["b2"]
    return out.reshape(B, N, -1)


# ----------------------------------------------------------------------------
# Main
# ----------------------------------------------------------------------------
if __name__ == "__main__":
    B, H, W = 2, 8, 8
    C = 10           # in_features (UNeXt uses shift_size=5; module needs hidden==C)
    hidden = C
    C_out = C
    shift_size = 5

    key = jax.random.PRNGKey(0)
    k1, k2, k3, kx = jax.random.split(key, 4)

    params = {
        "w1": jax.random.normal(k1, (C, hidden), jnp.float32) * 0.02,
        "b1": jnp.zeros((1, hidden), jnp.float32),
        # Conv2d depthwise init: fan_out = 3*3*hidden/hidden = 9 -> std sqrt(2/9)
        "w_dw": jax.random.normal(k2, (9, hidden), jnp.float32)
                * math.sqrt(2.0 / 9.0),
        "b_dw": jnp.zeros((1, hidden), jnp.float32),
        "w2": jax.random.normal(k3, (hidden, C_out), jnp.float32) * 0.02,
        "b2": jnp.zeros((1, C_out), jnp.float32),
    }

    x = jax.random.normal(kx, (B, H * W, C), jnp.float32)

    out = shiftmlp_forward(x, H, W, params, shift_size=shift_size)
    out = jax.block_until_ready(out)
    assert out.shape == (B, H * W, C_out), out.shape

    ref = jax.block_until_ready(
        shiftmlp_reference(x, H, W, params, shift_size=shift_size))
    max_err = float(jnp.max(jnp.abs(out - ref)))
    # bf16 activations/weights on the MXU + tanh GELU vs. exact-erf f32 reference:
    # errors are ~1e-4 at these magnitudes; real shift/index bugs show up at ~1e-2.
    assert max_err < 2e-3, f"mismatch vs reference: {max_err}"

    # Also exercise the row-banded (v7x VMEM) path: 2 bands of H/2 image rows.
    out_banded = jax.block_until_ready(
        shiftmlp_forward(x, H, W, params, shift_size=shift_size, h_band=H // 2))
    max_err_b = float(jnp.max(jnp.abs(out_banded - ref)))
    assert max_err_b < 2e-3, f"banded-path mismatch vs reference: {max_err_b}"

    print("KERNEL_OK")
</pallas_src>

<mosaic_0001>
module attributes {stable_mosaic.version = 11 : i64} {
  func.func @k(%arg0: memref<8x128xf32, #tpu.memory_space<vmem>>, %arg1: memref<8x128xf32, #tpu.memory_space<vmem>>) attributes {dimension_semantics = [], scalar_prefetch = 0 : i64, scratch_operands = 0 : i64, tpu.core_type = #tpu.core_type<tc>} {
    %c0 = arith.constant 0 : index
    %c0_0 = arith.constant 0 : index
    %0 = vector.load %arg0[%c0, %c0_0] : memref<8x128xf32, #tpu.memory_space<vmem>>, vector<8x128xf32>
    %c1_i32 = arith.constant 1 : i32
    %1 = tpu.dynamic_rotate %0 by %c1_i32 dim 0 : vector<8x128xf32>, i32 -> vector<8x128xf32>
    %c0_1 = arith.constant 0 : index
    %c0_2 = arith.constant 0 : index
    %2 = vector.load %arg1[%c0_1, %c0_2] : memref<8x128xf32, #tpu.memory_space<vmem>>, vector<8x128xf32>
    tpu.vector_store %arg1[%c0_1, %c0_2], %1 {strides = array<i32>} : memref<8x128xf32, #tpu.memory_space<vmem>>, vector<8x128xf32>,
    return
  }
}

module attributes {stable_mosaic.version = 11 : i64} {
  func.func @kernel(%arg0: i32, %arg1: i32, %arg2: memref<1x112x128xbf16, #tpu.memory_space<vmem>>, %arg3: memref<128x128xbf16, #tpu.memory_space<vmem>>, %arg4: memref<1x128xf32, #tpu.memory_space<vmem>>, %arg5: memref<9x128xf32, #tpu.memory_space<vmem>>, %arg6: memref<1x128xf32, #tpu.memory_space<vmem>>, %arg7: memref<128x128xbf16, #tpu.memory_space<vmem>>, %arg8: memref<1x128xf32, #tpu.memory_space<vmem>>, %arg9: memref<1x64x128xf32, #tpu.memory_space<vmem>>) attributes {dimension_semantics = [#tpu.dimension_semantics<parallel>, #tpu.dimension_semantics<parallel>], iteration_bounds = array<i64: 2, 1>, scalar_prefetch = 0 : i64, scratch_operands = 0 : i64, tpu.core_type = #tpu.core_type<tc>, window_params = [{transform_indices = @transform_0, window_bounds = array<i64: 1, 112, 128>}, {pipeline_mode = #tpu.pipeline_mode<synchronous>, transform_indices = @transform_1, window_bounds = array<i64: 128, 128>}, {pipeline_mode = #tpu.pipeline_mode<synchronous>, transform_indices = @transform_2, window_bounds = array<i64: 1, 128>}, {pipeline_mode = #tpu.pipeline_mode<synchronous>, transform_indices = @transform_3, window_bounds = array<i64: 9, 128>}, {pipeline_mode = #tpu.pipeline_mode<synchronous>, transform_indices = @transform_4, window_bounds = array<i64: 1, 128>}, {pipeline_mode = #tpu.pipeline_mode<synchronous>, transform_indices = @transform_5, window_bounds = array<i64: 128, 128>}, {pipeline_mode = #tpu.pipeline_mode<synchronous>, transform_indices = @transform_6, window_bounds = array<i64: 1, 128>}, {transform_indices = @transform_7, window_bounds = array<i64: 1, 64, 128>}]} {
    %c64_i32 = arith.constant 64 : i32
    %0 = arith.muli %arg1, %c64_i32 : i32
    %1 = tpu.iota {dimensions = array<i32: 1>} : vector<1x128xi32>
    %2 = tpu.iota {dimensions = array<i32: 1>} : vector<1x128xi32>
    %3 = tpu.iota {dimensions = array<i32: 0>} : vector<80x1xi32>
    %c7_i32 = arith.constant 7 : i32
    %4 = vector.broadcast %c7_i32 : i32 to vector<80x1xi32>
    %5 = arith.andi %3, %4 : vector<80x1xi32>
    %6 = vector.extract_strided_slice %5 {offsets = [0, 0], sizes = [64, 1], strides = [1, 1]} : vector<80x1xi32> to vector<64x1xi32>
    %c32_i32 = arith.constant 32 : i32
    %7 = arith.addi %0, %c32_i32 : i32
    %8 = tpu.assume_multiple %7, 8 : i32
    %c0 = arith.constant 0 : index
    %9 = arith.index_cast %8 : i32 to index
    %c0_0 = arith.constant 0 : index
    %10 = vector.load %arg2[%c0, %9, %c0_0] : memref<1x112x128xbf16, #tpu.memory_space<vmem>>, vector<1x80x128xbf16>
    %11 = vector.shape_cast %10 : vector<1x80x128xbf16> to vector<80x128xbf16>
    %c2_i32 = arith.constant 2 : i32
    %12 = vector.broadcast %c2_i32 : i32 to vector<1x128xi32>
    %13 = arith.cmpi sge, %1, %12 : vector<1x128xi32>
    %c24_i32 = arith.constant 24 : i32
    %14 = arith.addi %0, %c24_i32 : i32
    %15 = tpu.assume_multiple %14, 8 : i32
    %c0_1 = arith.constant 0 : index
    %16 = arith.index_cast %15 : i32 to index
    %c0_2 = arith.constant 0 : index
    %17 = vector.load %arg2[%c0_1, %16, %c0_2] : memref<1x112x128xbf16, #tpu.memory_space<vmem>>, vector<1x80x128xbf16>
    %18 = vector.shape_cast %17 : vector<1x80x128xbf16> to vector<80x128xbf16>
    %19 = vector.shape_cast %13 : vector<1x128xi1> to vector<1x128xi1>
    %20 = vector.broadcast %19 : vector<1x128xi1> to vector<80x128xi1>
    %21 = arith.select %20, %18, %11 : vector<80x128xi1>, vector<80x128xbf16>
    %c4_i32 = arith.constant 4 : i32
    %22 = vector.broadcast %c4_i32 : i32 to vector<1x128xi32>
    %23 = arith.cmpi sge, %1, %22 : vector<1x128xi32>
    %c16_i32 = arith.constant 16 : i32
    %24 = arith.addi %0, %c16_i32 : i32
    %25 = tpu.assume_multiple %24, 8 : i32
    %c0_3 = arith.constant 0 : index
    %26 = arith.index_cast %25 : i32 to index
    %c0_4 = arith.constant 0 : index
    %27 = vector.load %arg2[%c0_3, %26, %c0_4] : memref<1x112x128xbf16, #tpu.memory_space<vmem>>, vector<1x80x128xbf16>
    %28 = vector.shape_cast %27 : vector<1x80x128xbf16> to vector<80x128xbf16>
    %29 = vector.shape_cast %23 : vector<1x128xi1> to vector<1x128xi1>
    %30 = vector.broadcast %29 : vector<1x128xi1> to vector<80x128xi1>
    %31 = arith.select %30, %28, %21 : vector<80x128xi1>, vector<80x128xbf16>
    %c6_i32 = arith.constant 6 : i32
    %32 = vector.broadcast %c6_i32 : i32 to vector<1x128xi32>
    %33 = arith.cmpi sge, %1, %32 : vector<1x128xi32>
    %c8_i32 = arith.constant 8 : i32
    %34 = arith.addi %0, %c8_i32 : i32
    %35 = tpu.assume_multiple %34, 8 : i32
    %c0_5 = arith.constant 0 : index
    %36 = arith.index_cast %35 : i32 to index
    %c0_6 = arith.constant 0 : index
    %37 = vector.load %arg2[%c0_5, %36, %c0_6] : memref<1x112x128xbf16, #tpu.memory_space<vmem>>, vector<1x80x128xbf16>
    %38 = vector.shape_cast %37 : vector<1x80x128xbf16> to vector<80x128xbf16>
    %39 = vector.shape_cast %33 : vector<1x128xi1> to vector<1x128xi1>
    %40 = vector.broadcast %39 : vector<1x128xi1> to vector<80x128xi1>
    %41 = arith.select %40, %38, %31 : vector<80x128xi1>, vector<80x128xbf16>
    %c8_i32_7 = arith.constant 8 : i32
    %42 = vector.broadcast %c8_i32_7 : i32 to vector<1x128xi32>
    %43 = arith.cmpi sge, %1, %42 : vector<1x128xi32>
    %c0_i32 = arith.constant 0 : i32
    %44 = arith.addi %0, %c0_i32 : i32
    %45 = tpu.assume_multiple %44, 8 : i32
    %c0_8 = arith.constant 0 : index
    %46 = arith.index_cast %45 : i32 to index
    %c0_9 = arith.constant 0 : index
    %47 = vector.load %arg2[%c0_8, %46, %c0_9] : memref<1x112x128xbf16, #tpu.memory_space<vmem>>, vector<1x80x128xbf16>
    %48 = vector.shape_cast %47 : vector<1x80x128xbf16> to vector<80x128xbf16>
    %49 = vector.shape_cast %43 : vector<1x128xi1> to vector<1x128xi1>
    %50 = vector.broadcast %49 : vector<1x128xi1> to vector<80x128xi1>
    %51 = arith.select %50, %48, %41 : vector<80x128xi1>, vector<80x128xbf16>
    %c0_10 = arith.constant 0 : index
    %c0_11 = arith.constant 0 : index
    %52 = vector.load %arg3[%c0_10, %c0_11] : memref<128x128xbf16, #tpu.memory_space<vmem>>, vector<128x128xbf16>
    %cst = arith.constant dense<0.000000e+00> : vector<80x128xf32>
    %53 = tpu.matmul %51, %52, %cst {dimension_numbers = #tpu.dot_dimension_numbers<[1], [0], [0], [1], [0, 0, 1, 1], [], []>} : vector<80x128xbf16>, vector<128x128xbf16>, vector<80x128xf32> -> vector<80x128xf32>
    %c0_12 = arith.constant 0 : index
    %c0_13 = arith.constant 0 : index
    %54 = vector.load %arg4[%c0_12, %c0_13] : memref<1x128xf32, #tpu.memory_space<vmem>>, vector<1x128xf32>
    %55 = vector.broadcast %54 : vector<1x128xf32> to vector<80x128xf32>
    %56 = arith.addf %53, %55 : vector<80x128xf32>
    %c8_i32_14 = arith.constant 8 : i32
    %57 = arith.subi %0, %c8_i32_14 : i32
    %58 = vector.broadcast %57 : i32 to vector<80x1xi32>
    %59 = arith.addi %3, %58 : vector<80x1xi32>
    %c0_i32_15 = arith.constant 0 : i32
    %60 = vector.broadcast %c0_i32_15 : i32 to vector<80x1xi32>
    %61 = arith.cmpi sge, %59, %60 : vector<80x1xi32>
    %c64_i32_16 = arith.constant 64 : i32
    %62 = vector.broadcast %c64_i32_16 : i32 to vector<80x1xi32>
    %63 = arith.cmpi slt, %59, %62 : vector<80x1xi32>
    %64 = arith.andi %61, %63 : vector<80x1xi1>
    %cst_17 = arith.constant 0.000000e+00 : f32
    %65 = vector.shape_cast %64 : vector<80x1xi1> to vector<80x1xi1>
    %66 = vector.broadcast %65 : vector<80x1xi1> to vector<80x128xi1>
    %67 = vector.broadcast %cst_17 : f32 to vector<80x128xf32>
    %68 = arith.select %66, %56, %67 : vector<80x128xi1>, vector<80x128xf32>
    %c7_i32_18 = arith.constant 7 : i32
    %69 = vector.broadcast %c7_i32_18 : i32 to vector<80x1xi32>
    %70 = arith.cmpi slt, %5, %69 : vector<80x1xi32>
    %71 = vector.extract_strided_slice %68 {offsets = [1, 0], sizes = [79, 128], strides = [1, 1]} : vector<80x128xf32> to vector<79x128xf32>
    %72 = vector.extract_strided_slice %68 {offsets = [0, 0], sizes = [1, 128], strides = [1, 1]} : vector<80x128xf32> to vector<1x128xf32>
    %73 = tpu.concatenate %71, %72 in 0 : vector<79x128xf32>, vector<1x128xf32> -> vector<80x128xf32>
    %cst_19 = arith.constant 0.000000e+00 : f32
    %74 = vector.shape_cast %70 : vector<80x1xi1> to vector<80x1xi1>
    %75 = vector.broadcast %74 : vector<80x1xi1> to vector<80x128xi1>
    %76 = vector.broadcast %cst_19 : f32 to vector<80x128xf32>
    %77 = arith.select %75, %73, %76 : vector<80x128xi1>, vector<80x128xf32>
    %c1_i32 = arith.constant 1 : i32
    %78 = vector.broadcast %c1_i32 : i32 to vector<80x1xi32>
    %79 = arith.cmpi sge, %5, %78 : vector<80x1xi32>
    %80 = vector.extract_strided_slice %68 {offsets = [79, 0], sizes = [1, 128], strides = [1, 1]} : vector<80x128xf32> to vector<1x128xf32>
    %81 = vector.extract_strided_slice %68 {offsets = [0, 0], sizes = [79, 128], strides = [1, 1]} : vector<80x128xf32> to vector<79x128xf32>
    %82 = tpu.concatenate %80, %81 in 0 : vector<1x128xf32>, vector<79x128xf32> -> vector<80x128xf32>
    %cst_20 = arith.constant 0.000000e+00 : f32
    %83 = vector.shape_cast %79 : vector<80x1xi1> to vector<80x1xi1>
    %84 = vector.broadcast %83 : vector<80x1xi1> to vector<80x128xi1>
    %85 = vector.broadcast %cst_20 : f32 to vector<80x128xf32>
    %86 = arith.select %84, %82, %85 : vector<80x128xi1>, vector<80x128xf32>
    %cst_21 = arith.constant 0.000000e+00 : f32
    %87 = vector.broadcast %cst_21 : f32 to vector<64x128xf32>
    %88 = vector.extract_strided_slice %86 {offsets = [0, 0], sizes = [64, 128], strides = [1, 1]} : vector<80x128xf32> to vector<64x128xf32>
    %c0_22 = arith.constant 0 : index
    %c0_23 = arith.constant 0 : index
    %89 = vector.load %arg5[%c0_22, %c0_23] : memref<9x128xf32, #tpu.memory_space<vmem>>, vector<1x128xf32>
    %90 = vector.broadcast %89 : vector<1x128xf32> to vector<64x128xf32>
    %91 = arith.mulf %88, %90 : vector<64x128xf32>
    %92 = arith.addf %87, %91 : vector<64x128xf32>
    %93 = vector.extract_strided_slice %68 {offsets = [0, 0], sizes = [64, 128], strides = [1, 1]} : vector<80x128xf32> to vector<64x128xf32>
    %c1 = arith.constant 1 : index
    %c0_24 = arith.constant 0 : index
    %94 = vector.load %arg5[%c1, %c0_24] : memref<9x128xf32, #tpu.memory_space<vmem>>, vector<1x128xf32>
    %95 = vector.broadcast %94 : vector<1x128xf32> to vector<64x128xf32>
    %96 = arith.mulf %93, %95 : vector<64x128xf32>
    %97 = arith.addf %92, %96 : vector<64x128xf32>
    %98 = vector.extract_strided_slice %77 {offsets = [0, 0], sizes = [64, 128], strides = [1, 1]} : vector<80x128xf32> to vector<64x128xf32>
    %c2 = arith.constant 2 : index
    %c0_25 = arith.constant 0 : index
    %99 = vector.load %arg5[%c2, %c0_25] : memref<9x128xf32, #tpu.memory_space<vmem>>, vector<1x128xf32>
    %100 = vector.broadcast %99 : vector<1x128xf32> to vector<64x128xf32>
    %101 = arith.mulf %98, %100 : vector<64x128xf32>
    %102 = arith.addf %97, %101 : vector<64x128xf32>
    %103 = vector.extract_strided_slice %86 {offsets = [8, 0], sizes = [64, 128], strides = [1, 1]} : vector<80x128xf32> to vector<64x128xf32>
    %c3 = arith.constant 3 : index
    %c0_26 = arith.constant 0 : index
    %104 = vector.load %arg5[%c3, %c0_26] : memref<9x128xf32, #tpu.memory_space<vmem>>, vector<1x128xf32>
    %105 = vector.broadcast %104 : vector<1x128xf32> to vector<64x128xf32>
    %106 = arith.mulf %103, %105 : vector<64x128xf32>
    %107 = arith.addf %102, %106 : vector<64x128xf32>
    %108 = vector.extract_strided_slice %68 {offsets = [8, 0], sizes = [64, 128], strides = [1, 1]} : vector<80x128xf32> to vector<64x128xf32>
    %c4 = arith.constant 4 : index
    %c0_27 = arith.constant 0 : index
    %109 = vector.load %arg5[%c4, %c0_27] : memref<9x128xf32, #tpu.memory_space<vmem>>, vector<1x128xf32>
    %110 = vector.broadcast %109 : vector<1x128xf32> to vector<64x128xf32>
    %111 = arith.mulf %108, %110 : vector<64x128xf32>
    %112 = arith.addf %107, %111 : vector<64x128xf32>
    %113 = vector.extract_strided_slice %77 {offsets = [8, 0], sizes = [64, 128], strides = [1, 1]} : vector<80x128xf32> to vector<64x128xf32>
    %c5 = arith.constant 5 : index
    %c0_28 = arith.constant 0 : index
    %114 = vector.load %arg5[%c5, %c0_28] : memref<9x128xf32, #tpu.memory_space<vmem>>, vector<1x128xf32>
    %115 = vector.broadcast %114 : vector<1x128xf32> to vector<64x128xf32>
    %116 = arith.mulf %113, %115 : vector<64x128xf32>
    %117 = arith.addf %112, %116 : vector<64x128xf32>
    %118 = vector.extract_strided_slice %86 {offsets = [16, 0], sizes = [64, 128], strides = [1, 1]} : vector<80x128xf32> to vector<64x128xf32>
    %c6 = arith.constant 6 : index
    %c0_29 = arith.constant 0 : index
    %119 = vector.load %arg5[%c6, %c0_29] : memref<9x128xf32, #tpu.memory_space<vmem>>, vector<1x128xf32>
    %120 = vector.broadcast %119 : vector<1x128xf32> to vector<64x128xf32>
    %121 = arith.mulf %118, %120 : vector<64x128xf32>
    %122 = arith.addf %117, %121 : vector<64x128xf32>
    %123 = vector.extract_strided_slice %68 {offsets = [16, 0], sizes = [64, 128], strides = [1, 1]} : vector<80x128xf32> to vector<64x128xf32>
    %c7 = arith.constant 7 : index
    %c0_30 = arith.constant 0 : index
    %124 = vector.load %arg5[%c7, %c0_30] : memref<9x128xf32, #tpu.memory_space<vmem>>, vector<1x128xf32>
    %125 = vector.broadcast %124 : vector<1x128xf32> to vector<64x128xf32>
    %126 = arith.mulf %123, %125 : vector<64x128xf32>
    %127 = arith.addf %122, %126 : vector<64x128xf32>
    %128 = vector.extract_strided_slice %77 {offsets = [16, 0], sizes = [64, 128], strides = [1, 1]} : vector<80x128xf32> to vector<64x128xf32>
    %c8 = arith.constant 8 : index
    %c0_31 = arith.constant 0 : index
    %129 = vector.load %arg5[%c8, %c0_31] : memref<9x128xf32, #tpu.memory_space<vmem>>, vector<1x128xf32>
    %130 = vector.broadcast %129 : vector<1x128xf32> to vector<64x128xf32>
    %131 = arith.mulf %128, %130 : vector<64x128xf32>
    %132 = arith.addf %127, %131 : vector<64x128xf32>
    %c0_32 = arith.constant 0 : index
    %c0_33 = arith.constant 0 : index
    %133 = vector.load %arg6[%c0_32, %c0_33] : memref<1x128xf32, #tpu.memory_space<vmem>>, vector<1x128xf32>
    %134 = vector.broadcast %133 : vector<1x128xf32> to vector<64x128xf32>
    %135 = arith.addf %132, %134 : vector<64x128xf32>
    %cst_34 = arith.constant 5.000000e-01 : f32
    %136 = vector.broadcast %cst_34 : f32 to vector<64x128xf32>
    %137 = arith.mulf %136, %135 : vector<64x128xf32>
    %cst_35 = arith.constant 4.471500e-02 : f32
    %138 = vector.broadcast %cst_35 : f32 to vector<64x128xf32>
    %139 = arith.mulf %138, %135 : vector<64x128xf32>
    %140 = arith.mulf %139, %135 : vector<64x128xf32>
    %141 = arith.mulf %140, %135 : vector<64x128xf32>
    %142 = arith.addf %135, %141 : vector<64x128xf32>
    %cst_36 = arith.constant 0.797884583 : f32
    %143 = vector.broadcast %cst_36 : f32 to vector<64x128xf32>
    %144 = arith.mulf %143, %142 : vector<64x128xf32>
    %145 = math.tanh %144 : vector<64x128xf32>
    %cst_37 = arith.constant 1.000000e+00 : f32
    %146 = vector.broadcast %cst_37 : f32 to vector<64x128xf32>
    %147 = arith.addf %146, %145 : vector<64x128xf32>
    %148 = arith.mulf %137, %147 : vector<64x128xf32>
    %cst_38 = arith.constant 0.000000e+00 : f32
    %149 = vector.broadcast %cst_38 : f32 to vector<64x128xf32>
    %c0_i32_39 = arith.constant 0 : i32
    %150 = vector.broadcast %c0_i32_39 : i32 to vector<1x128xi32>
    %151 = arith.cmpi sge, %2, %150 : vector<1x128xi32>
    %c2_i32_40 = arith.constant 2 : i32
    %152 = vector.broadcast %c2_i32_40 : i32 to vector<1x128xi32>
    %153 = arith.cmpi slt, %2, %152 : vector<1x128xi32>
    %154 = arith.andi %151, %153 : vector<1x128xi1>
    %c6_i32_41 = arith.constant 6 : i32
    %155 = vector.broadcast %c6_i32_41 : i32 to vector<64x1xi32>
    %156 = arith.cmpi slt, %6, %155 : vector<64x1xi32>
    %157 = vector.broadcast %154 : vector<1x128xi1> to vector<64x128xi1>
    %158 = vector.broadcast %156 : vector<64x1xi1> to vector<64x128xi1>
    %159 = arith.andi %157, %158 : vector<64x128xi1>
    %160 = vector.extract_strided_slice %148 {offsets = [2, 0], sizes = [62, 128], strides = [1, 1]} : vector<64x128xf32> to vector<62x128xf32>
    %161 = vector.extract_strided_slice %148 {offsets = [0, 0], sizes = [2, 128], strides = [1, 1]} : vector<64x128xf32> to vector<2x128xf32>
    %162 = tpu.concatenate %160, %161 in 0 : vector<62x128xf32>, vector<2x128xf32> -> vector<64x128xf32>
    %163 = arith.select %159, %162, %149 : vector<64x128xi1>, vector<64x128xf32>
    %c2_i32_42 = arith.constant 2 : i32
    %164 = vector.broadcast %c2_i32_42 : i32 to vector<1x128xi32>
    %165 = arith.cmpi sge, %2, %164 : vector<1x128xi32>
    %c4_i32_43 = arith.constant 4 : i32
    %166 = vector.broadcast %c4_i32_43 : i32 to vector<1x128xi32>
    %167 = arith.cmpi slt, %2, %166 : vector<1x128xi32>
    %168 = arith.andi %165, %167 : vector<1x128xi1>
    %c7_i32_44 = arith.constant 7 : i32
    %169 = vector.broadcast %c7_i32_44 : i32 to vector<64x1xi32>
    %170 = arith.cmpi slt, %6, %169 : vector<64x1xi32>
    %171 = vector.broadcast %168 : vector<1x128xi1> to vector<64x128xi1>
    %172 = vector.broadcast %170 : vector<64x1xi1> to vector<64x128xi1>
    %173 = arith.andi %171, %172 : vector<64x128xi1>
    %174 = vector.extract_strided_slice %148 {offsets = [1, 0], sizes = [63, 128], strides = [1, 1]} : vector<64x128xf32> to vector<63x128xf32>
    %175 = vector.extract_strided_slice %148 {offsets = [0, 0], sizes = [1, 128], strides = [1, 1]} : vector<64x128xf32> to vector<1x128xf32>
    %176 = tpu.concatenate %174, %175 in 0 : vector<63x128xf32>, vector<1x128xf32> -> vector<64x128xf32>
    %177 = arith.select %173, %176, %163 : vector<64x128xi1>, vector<64x128xf32>
    %c4_i32_45 = arith.constant 4 : i32
    %178 = vector.broadcast %c4_i32_45 : i32 to vector<1x128xi32>
    %179 = arith.cmpi sge, %2, %178 : vector<1x128xi32>
    %c6_i32_46 = arith.constant 6 : i32
    %180 = vector.broadcast %c6_i32_46 : i32 to vector<1x128xi32>
    %181 = arith.cmpi slt, %2, %180 : vector<1x128xi32>
    %182 = arith.andi %179, %181 : vector<1x128xi1>
    %183 = vector.shape_cast %182 : vector<1x128xi1> to vector<1x128xi1>
    %184 = vector.broadcast %183 : vector<1x128xi1> to vector<64x128xi1>
    %185 = arith.select %184, %148, %177 : vector<64x128xi1>, vector<64x128xf32>
    %c6_i32_47 = arith.constant 6 : i32
    %186 = vector.broadcast %c6_i32_47 : i32 to vector<1x128xi32>
    %187 = arith.cmpi sge, %2, %186 : vector<1x128xi32>
    %c8_i32_48 = arith.constant 8 : i32
    %188 = vector.broadcast %c8_i32_48 : i32 to vector<1x128xi32>
    %189 = arith.cmpi slt, %2, %188 : vector<1x128xi32>
    %190 = arith.andi %187, %189 : vector<1x128xi1>
    %c1_i32_49 = arith.constant 1 : i32
    %191 = vector.broadcast %c1_i32_49 : i32 to vector<64x1xi32>
    %192 = arith.cmpi sge, %6, %191 : vector<64x1xi32>
    %193 = vector.broadcast %190 : vector<1x128xi1> to vector<64x128xi1>
    %194 = vector.broadcast %192 : vector<64x1xi1> to vector<64x128xi1>
    %195 = arith.andi %193, %194 : vector<64x128xi1>
    %196 = vector.extract_strided_slice %148 {offsets = [63, 0], sizes = [1, 128], strides = [1, 1]} : vector<64x128xf32> to vector<1x128xf32>
    %197 = vector.extract_strided_slice %148 {offsets = [0, 0], sizes = [63, 128], strides = [1, 1]} : vector<64x128xf32> to vector<63x128xf32>
    %198 = tpu.concatenate %196, %197 in 0 : vector<1x128xf32>, vector<63x128xf32> -> vector<64x128xf32>
    %199 = arith.select %195, %198, %185 : vector<64x128xi1>, vector<64x128xf32>
    %c8_i32_50 = arith.constant 8 : i32
    %200 = vector.broadcast %c8_i32_50 : i32 to vector<1x128xi32>
    %201 = arith.cmpi sge, %2, %200 : vector<1x128xi32>
    %c10_i32 = arith.constant 10 : i32
    %202 = vector.broadcast %c10_i32 : i32 to vector<1x128xi32>
    %203 = arith.cmpi slt, %2, %202 : vector<1x128xi32>
    %204 = arith.andi %201, %203 : vector<1x128xi1>
    %c2_i32_51 = arith.constant 2 : i32
    %205 = vector.broadcast %c2_i32_51 : i32 to vector<64x1xi32>
    %206 = arith.cmpi sge, %6, %205 : vector<64x1xi32>
    %207 = vector.broadcast %204 : vector<1x128xi1> to vector<64x128xi1>
    %208 = vector.broadcast %206 : vector<64x1xi1> to vector<64x128xi1>
    %209 = arith.andi %207, %208 : vector<64x128xi1>
    %210 = vector.extract_strided_slice %148 {offsets = [62, 0], sizes = [2, 128], strides = [1, 1]} : vector<64x128xf32> to vector<2x128xf32>
    %211 = vector.extract_strided_slice %148 {offsets = [0, 0], sizes = [62, 128], strides = [1, 1]} : vector<64x128xf32> to vector<62x128xf32>
    %212 = tpu.concatenate %210, %211 in 0 : vector<2x128xf32>, vector<62x128xf32> -> vector<64x128xf32>
    %213 = arith.select %209, %212, %199 : vector<64x128xi1>, vector<64x128xf32>
    %214 = arith.truncf %213 : vector<64x128xf32> to vector<64x128xbf16>
    %c0_52 = arith.constant 0 : index
    %c0_53 = arith.constant 0 : index
    %215 = vector.load %arg7[%c0_52, %c0_53] : memref<128x128xbf16, #tpu.memory_space<vmem>>, vector<128x128xbf16>
    %cst_54 = arith.constant dense<0.000000e+00> : vector<64x128xf32>
    %216 = tpu.matmul %214, %215, %cst_54 {dimension_numbers = #tpu.dot_dimension_numbers<[1], [0], [0], [1], [0, 0, 1, 1], [], []>} : vector<64x128xbf16>, vector<128x128xbf16>, vector<64x128xf32> -> vector<64x128xf32>
    %c0_55 = arith.constant 0 : index
    %c0_56 = arith.constant 0 : index
    %217 = vector.load %arg8[%c0_55, %c0_56] : memref<1x128xf32, #tpu.memory_space<vmem>>, vector<1x128xf32>
    %218 = vector.broadcast %217 : vector<1x128xf32> to vector<64x128xf32>
    %219 = arith.addf %216, %218 : vector<64x128xf32>
    %c0_57 = arith.constant 0 : index
    %c0_58 = arith.constant 0 : index
    %c0_59 = arith.constant 0 : index
    %220 = vector.load %arg9[%c0_57, %c0_58, %c0_59] : memref<1x64x128xf32, #tpu.memory_space<vmem>>, vector<1x64x128xf32>
    %221 = vector.shape_cast %220 : vector<1x64x128xf32> to vector<64x128xf32>
    %222 = vector.shape_cast %219 : vector<64x128xf32> to vector<1x64x128xf32>
    tpu.vector_store %arg9[%c0_57, %c0_58, %c0_59], %222 {strides = array<i32>} : memref<1x64x128xf32, #tpu.memory_space<vmem>>, vector<1x64x128xf32>,
    return
  }
  func.func @transform_0(%arg0: i32, %arg1: i32) -> (i32, i32, i32) {
    %c0_i32 = arith.constant 0 : i32
    %c0_i32_0 = arith.constant 0 : i32
    %c0_i32_1 = arith.constant 0 : i32
    return %arg0, %c0_i32, %c0_i32_0 : i32, i32, i32
  }
  func.func @transform_1(%arg0: i32, %arg1: i32) -> (i32, i32) {
    %c0_i32 = arith.constant 0 : i32
    %c0_i32_0 = arith.constant 0 : i32
    %c0_i32_1 = arith.constant 0 : i32
    return %c0_i32, %c0_i32_0 : i32, i32
  }
  func.func @transform_2(%arg0: i32, %arg1: i32) -> (i32, i32) {
    %c0_i32 = arith.constant 0 : i32
    %c0_i32_0 = arith.constant 0 : i32
    %c0_i32_1 = arith.constant 0 : i32
    return %c0_i32, %c0_i32_0 : i32, i32
  }
  func.func @transform_3(%arg0: i32, %arg1: i32) -> (i32, i32) {
    %c0_i32 = arith.constant 0 : i32
    %c0_i32_0 = arith.constant 0 : i32
    %c0_i32_1 = arith.constant 0 : i32
    return %c0_i32, %c0_i32_0 : i32, i32
  }
  func.func @transform_4(%arg0: i32, %arg1: i32) -> (i32, i32) {
    %c0_i32 = arith.constant 0 : i32
    %c0_i32_0 = arith.constant 0 : i32
    %c0_i32_1 = arith.constant 0 : i32
    return %c0_i32, %c0_i32_0 : i32, i32
  }
  func.func @transform_5(%arg0: i32, %arg1: i32) -> (i32, i32) {
    %c0_i32 = arith.constant 0 : i32
    %c0_i32_0 = arith.constant 0 : i32
    %c0_i32_1 = arith.constant 0 : i32
    return %c0_i32, %c0_i32_0 : i32, i32
  }
  func.func @transform_6(%arg0: i32, %arg1: i32) -> (i32, i32) {
    %c0_i32 = arith.constant 0 : i32
    %c0_i32_0 = arith.constant 0 : i32
    %c0_i32_1 = arith.constant 0 : i32
    return %c0_i32, %c0_i32_0 : i32, i32
  }
  func.func @transform_7(%arg0: i32, %arg1: i32) -> (i32, i32, i32) {
    %c0_i32 = arith.constant 0 : i32
    %c0_i32_0 = arith.constant 0 : i32
    return %arg0, %arg1, %c0_i32 : i32, i32, i32
  }
}

</mosaic_0001>

<llo_original>
// kernel: tpu_custom_call.1
$region0: #{tpu_custom_call.1}
  #allocation0 [shape = 'u32[]', space=smem, size = 0x4, offset = 0x4, fixed_abs, tag = 'smem constant byte address 0x4 - core index']
  #allocation1 [shape = 'u32[144,128]{1,0:T(1,128)}', space=vmem, size = 0x12000, scoped, tag = 'internal scratch']
  %s0 = inlined_call_operand.hbm [shape: f32[8,128], index: 0, kind: input, shape index: {}]
  %s1 = inlined_call_operand.hbm [shape: f32[8,128], index: 1, kind: output, shape index: {}]
  %s2 = sld [smem:[#allocation0]]
  $region18: #{tpu_custom_call.1} parent=0
    _
  %s4 = ssub.s32 1, %s2
  %s5 = scalar_select 0, %s4, %s2
  $region1: #{tpu_custom_call.1} parent=0
    #allocation2 [shape = 'u8[4096]{0}', space=vmem, size = 0x1000, scoped, tag = 'input window, operand 0, single buffered']
    #allocation3 [shape = 's32[1]{0}', space=sflag, size = 0x4, scoped, tag = 'scoped memory for tpu_custom_call.1']
    #allocation4 [shape = 's32[1]{0}', space=sflag, size = 0x4, scoped, tag = 'scoped memory for tpu_custom_call.1']
    #allocation5 [shape = 'u8[4096]{0}', space=vmem, size = 0x1000, scoped, tag = 'output window, operand 0, single buffered']
    %6 = vsyncpa [#allocation3], 0
    %7 = vsyncpa [#allocation4], 0
    // Predicated region
    $region2: #{tpu_custom_call.1} parent=1 // pred_check
      _
    $region3: #{tpu_custom_call.1} parent=1 // pred_check_branch
      %9 = sbr.rel (0) target = $region5
    $region4: #{tpu_custom_call.1} parent=1 // pred_region
      %s11 = ssub.s32 128, 128
      %12 = vsyncadd [#allocation3], %s11
      %s14 = sshll.u32 [#allocation2], 4
      %s15 = int_to_ptr.vmem [resolvable:$true] %s14
      %17 = dma.hbm_to_vmem [thread:$0]  %s0, 128, %s15, [#allocation3]
    $region5: #{tpu_custom_call.1} parent=1 // pred_fallthru
      _
    // Predicated region
    $region6: #{tpu_custom_call.1} parent=1 // pred_check
      _
    $region7: #{tpu_custom_call.1} parent=1 // pred_check_branch
      %19 = sbr.rel (0) target = $region9
    $region8: #{tpu_custom_call.1} parent=1 // pred_region
      %20 = dma.done [#allocation3], 128
    $region9: #{tpu_custom_call.1} parent=1 // pred_fallthru
      _
    %v21 = vld [vmem:[#allocation2] sm:$0xff]
    %v22 = vrot.slane %v21, 7
    %23 = vst [vmem:[#allocation5] sm:$0xff] %v22
    // Predicated region
    $region10: #{tpu_custom_call.1} parent=1 // pred_check
      _
    $region11: #{tpu_custom_call.1} parent=1 // pred_check_branch
      %25 = sbr.rel (0) target = $region13
    $region12: #{tpu_custom_call.1} parent=1 // pred_region
      %s27 = ssub.s32 128, 128
      %28 = vsyncadd [#allocation4], %s27
      %s30 = sshll.u32 [#allocation5], 4
      %s31 = int_to_ptr.vmem [resolvable:$true] %s30
      %33 = dma.vmem_to_hbm [thread:$0]  %s31, 128, %s1, [#allocation4]
    $region13: #{tpu_custom_call.1} parent=1 // pred_fallthru
      _
    // Predicated region
    $region14: #{tpu_custom_call.1} parent=1 // pred_check
      _
    $region15: #{tpu_custom_call.1} parent=1 // pred_check_branch
      %35 = sbr.rel (0) target = $region17
    $region16: #{tpu_custom_call.1} parent=1 // pred_region
      %36 = dma.done [#allocation4], 128
    $region17: #{tpu_custom_call.1} parent=1 // pred_fallthru
      _
    %37 = vsyncpa [#allocation3], 1
    %38 = vsyncpa [#allocation4], 1

// kernel: tpu_custom_call.1
$region0: #{tpu_custom_call.1}
  #allocation0 [shape = 'u32[]', space=smem, size = 0x4, offset = 0x4, fixed_abs, tag = 'smem constant byte address 0x4 - core index']
  #allocation1 [shape = 'u32[144,128]{1,0:T(1,128)}', space=vmem, size = 0x12000, scoped, tag = 'internal scratch']
  %s0 = inlined_call_operand.hbm [shape: bf16[2,112,128], index: 0, kind: input, shape index: {}]
  %s1 = inlined_call_operand.hbm [shape: bf16[128,128], index: 1, kind: input, shape index: {}]
  %s2 = inlined_call_operand.vmem [shape: f32[1,128], index: 2, kind: input, shape index: {}]
  %s3 = inlined_call_operand.hbm [shape: f32[9,128], index: 3, kind: input, shape index: {}]
  %s4 = inlined_call_operand.vmem [shape: f32[1,128], index: 4, kind: input, shape index: {}]
  %s5 = inlined_call_operand.hbm [shape: bf16[128,128], index: 5, kind: input, shape index: {}]
  %s6 = inlined_call_operand.vmem [shape: f32[1,128], index: 6, kind: input, shape index: {}]
  %s7 = inlined_call_operand.hbm [shape: f32[2,64,128], index: 7, kind: output, shape index: {}]
  %s8 = sld [smem:[#allocation0]]
  $region77: #{tpu_custom_call.1} parent=0
    _
  %s10 = ssub.s32 1, %s8
  %s11 = scalar_select 0, %s10, %s8
  $region1: #{tpu_custom_call.1} parent=0
    #allocation2 [shape = 'u8[57344]{0}', space=vmem, size = 0xe000, scoped, tag = 'input window, operand 0']
    #allocation3 [shape = 's32[2]{0}', space=sflag, size = 0x8, scoped, tag = 'scoped memory for tpu_custom_call.1']
    #allocation4 [shape = 's32[2]{0}', space=sflag, size = 0x8, scoped, tag = 'scoped memory for tpu_custom_call.1']
    #allocation5 [shape = 'u8[32768]{0}', space=vmem, size = 0x8000, scoped, tag = 'input window, operand 1, single buffered']
    #allocation6 [shape = 's32[1]{0}', space=sflag, size = 0x4, scoped, tag = 'scoped memory for tpu_custom_call.1']
    #allocation7 [shape = 'u8[8192]{0}', space=vmem, size = 0x2000, scoped, tag = 'input window, operand 3, single buffered']
    #allocation8 [shape = 'u8[32768]{0}', space=vmem, size = 0x8000, scoped, tag = 'input window, operand 5, single buffered']
    #allocation9 [shape = 's32[1]{0}', space=sflag, size = 0x4, scoped, tag = 'scoped memory for tpu_custom_call.1']
    #allocation10 [shape = 'u8[65536]{0}', space=vmem, size = 0x10000, scoped, tag = 'output window, operand 0']
    %12 = vsyncpa [#allocation3], 0
    %s13 = scalar_lea.sflag [#allocation3], 1
    %14 = vsyncpa %s13, 0
    %15 = vsyncpa [#allocation6], 0
    %16 = vsyncpa [#allocation9], 0
    %17 = vsyncpa [#allocation4], 0
    %s18 = scalar_lea.sflag [#allocation4], 1
    %19 = vsyncpa %s18, 0
    loop: start=0, step=1, limit=4
    $region2: #{tpu_custom_call.1} parent=1 // loop_pre_header
      _
    $region3: #{tpu_custom_call.1} parent=1 // loop_header
      %s21 = sphi 0, %s25
      %p22 = scmp.ge.s32.totalorder %s21, 4
      %s28 = sphi 0, %s40
      %s29 = sphi 0, %s36
      %s30 = sphi 0, %s28
      %s31 = sphi 0, %s29
      %s32 = sphi 0, %s30
      %s33 = sphi 0, %s31
      %s43 = sphi 0, %s45
      %s46 = sphi 0, %s43
      %s47 = sphi 0, %s46
      %s63 = sphi 0, %s47
      %s67 = sphi 0, %s67
      %s69 = sphi 0, %s67
      %s70 = sphi 0, %s69
      %s84 = sphi 0, %s70
      %s88 = sphi 0, %s88
      %s90 = sphi 0, %s88
      %s91 = sphi 0, %s90
      %s105 = sphi 0, %s91
      %s109 = sphi 0, %s109
      %s111 = sphi 0, %s109
      %s112 = sphi 0, %s111
      %s126 = sphi 0, %s112
      %s130 = sphi 0, %s130
      %s132 = sphi 0, %s130
      %s133 = sphi 0, %s132
      %s147 = sphi 0, %s133
      %s151 = sphi 0, %s151
      %s153 = sphi 0, %s151
      %s154 = sphi 0, %s153
      %s168 = sphi 0, %s154
      %s172 = sphi 0, %s172
      %s174 = sphi 0, %s172
      %s175 = sphi 0, %s174
      %s189 = sphi 0, %s175
      %s197 = sphi 0, %s199
      %s200 = sphi 0, %s197
      %s201 = sphi 0, %s200
      %s217 = sphi 0, %s201
    $region4: #{tpu_custom_call.1} parent=1 // loop_header_branch
      %24 = sbr.rel (%p22) target = $region8
    $region5: #{tpu_custom_call.1} parent=1 // loop_body
      %s26 = ssub.s32 %s21, 1
      %s27 = ssub.s32 %s21, 2
      %s34 = sadd.s32 1, %s29
      %p35 = scmp.ge.s32.totalorder %s34, 1
      %s36 = scalar_select %p35, 0, %s34
      %s37 = sadd.s32 1, %s28
      %s38 = scalar_select %p35, %s37, %s28
      %p39 = scmp.ge.s32.totalorder %s38, 2
      %s40 = scalar_select %p39, 0, %s38
      %s41 = ssub.s32 %s28, %s40
      %p42 = scmp.eq.s32.totalorder %s41, 0
      %s44 = sadd.s32 %s43, 1
      %s45 = scalar_select %p42, %s43, %s44
      %p48 = pneg %p42
      %p49 = scmp.eq.s32.totalorder %s21, 1
      %p50 = por %p48, %p49
      %p51 = scmp.ne.s32.totalorder %s43, %s46
      %p52 = scmp.eq.s32.totalorder %s21, 0
      %p53 = por %p51, %p52
      %p54 = scmp.ne.s32.totalorder %s43, %s46
      %p55 = scmp.eq.s32.totalorder %s26, 1
      %p56 = por %p54, %p55
      %p57 = scmp.ne.s32.totalorder %s46, %s47
      %p58 = scmp.eq.s32.totalorder %s26, 0
      %p59 = por %p57, %p58
      %p60 = scmp.ne.s32.totalorder %s46, %s47
      %p61 = scmp.eq.s32.totalorder %s27, 1
      %p62 = por %p60, %p61
      %p64 = scmp.ne.s32.totalorder %s47, %s63
      %p65 = scmp.eq.s32.totalorder %s27, 0
      %p66 = por %p64, %p65
      %s68 = sadd.s32 %s67, 1
      %p71 = scmp.eq.s32.totalorder %s21, 1
      %p72 = scmp.ne.s32.totalorder %s67, %s69
      %p73 = scmp.eq.s32.totalorder %s21, 0
      %p74 = por %p72, %p73
      %p75 = scmp.ne.s32.totalorder %s67, %s69
      %p76 = scmp.eq.s32.totalorder %s26, 1
      %p77 = por %p75, %p76
      %p78 = scmp.ne.s32.totalorder %s69, %s70
      %p79 = scmp.eq.s32.totalorder %s26, 0
      %p80 = por %p78, %p79
      %p81 = scmp.ne.s32.totalorder %s69, %s70
      %p82 = scmp.eq.s32.totalorder %s27, 1
      %p83 = por %p81, %p82
      %p85 = scmp.ne.s32.totalorder %s70, %s84
      %p86 = scmp.eq.s32.totalorder %s27, 0
      %p87 = por %p85, %p86
      %s89 = sadd.s32 %s88, 1
      %p92 = scmp.eq.s32.totalorder %s21, 1
      %p93 = scmp.ne.s32.totalorder %s88, %s90
      %p94 = scmp.eq.s32.totalorder %s21, 0
      %p95 = por %p93, %p94
      %p96 = scmp.ne.s32.totalorder %s88, %s90
      %p97 = scmp.eq.s32.totalorder %s26, 1
      %p98 = por %p96, %p97
      %p99 = scmp.ne.s32.totalorder %s90, %s91
      %p100 = scmp.eq.s32.totalorder %s26, 0
      %p101 = por %p99, %p100
      %p102 = scmp.ne.s32.totalorder %s90, %s91
      %p103 = scmp.eq.s32.totalorder %s27, 1
      %p104 = por %p102, %p103
      %p106 = scmp.ne.s32.totalorder %s91, %s105
      %p107 = scmp.eq.s32.totalorder %s27, 0
      %p108 = por %p106, %p107
      %s110 = sadd.s32 %s109, 1
      %p113 = scmp.eq.s32.totalorder %s21, 1
      %p114 = scmp.ne.s32.totalorder %s109, %s111
      %p115 = scmp.eq.s32.totalorder %s21, 0
      %p116 = por %p114, %p115
      %p117 = scmp.ne.s32.totalorder %s109, %s111
      %p118 = scmp.eq.s32.totalorder %s26, 1
      %p119 = por %p117, %p118
      %p120 = scmp.ne.s32.totalorder %s111, %s112
      %p121 = scmp.eq.s32.totalorder %s26, 0
      %p122 = por %p120, %p121
      %p123 = scmp.ne.s32.totalorder %s111, %s112
      %p124 = scmp.eq.s32.totalorder %s27, 1
      %p125 = por %p123, %p124
      %p127 = scmp.ne.s32.totalorder %s112, %s126
      %p128 = scmp.eq.s32.totalorder %s27, 0
      %p129 = por %p127, %p128
      %s131 = sadd.s32 %s130, 1
      %p134 = scmp.eq.s32.totalorder %s21, 1
      %p135 = scmp.ne.s32.totalorder %s130, %s132
      %p136 = scmp.eq.s32.totalorder %s21, 0
      %p137 = por %p135, %p136
      %p138 = scmp.ne.s32.totalorder %s130, %s132
      %p139 = scmp.eq.s32.totalorder %s26, 1
      %p140 = por %p138, %p139
      %p141 = scmp.ne.s32.totalorder %s132, %s133
      %p142 = scmp.eq.s32.totalorder %s26, 0
      %p143 = por %p141, %p142
      %p144 = scmp.ne.s32.totalorder %s132, %s133
      %p145 = scmp.eq.s32.totalorder %s27, 1
      %p146 = por %p144, %p145
      %p148 = scmp.ne.s32.totalorder %s133, %s147
      %p149 = scmp.eq.s32.totalorder %s27, 0
      %p150 = por %p148, %p149
      %s152 = sadd.s32 %s151, 1
      %p155 = scmp.eq.s32.totalorder %s21, 1
      %p156 = scmp.ne.s32.totalorder %s151, %s153
      %p157 = scmp.eq.s32.totalorder %s21, 0
      %p158 = por %p156, %p157
      %p159 = scmp.ne.s32.totalorder %s151, %s153
      %p160 = scmp.eq.s32.totalorder %s26, 1
      %p161 = por %p159, %p160
      %p162 = scmp.ne.s32.totalorder %s153, %s154
      %p163 = scmp.eq.s32.totalorder %s26, 0
      %p164 = por %p162, %p163
      %p165 = scmp.ne.s32.totalorder %s153, %s154
      %p166 = scmp.eq.s32.totalorder %s27, 1
      %p167 = por %p165, %p166
      %p169 = scmp.ne.s32.totalorder %s154, %s168
      %p170 = scmp.eq.s32.totalorder %s27, 0
      %p171 = por %p169, %p170
      %s173 = sadd.s32 %s172, 1
      %p176 = scmp.eq.s32.totalorder %s21, 1
      %p177 = scmp.ne.s32.totalorder %s172, %s174
      %p178 = scmp.eq.s32.totalorder %s21, 0
      %p179 = por %p177, %p178
      %p180 = scmp.ne.s32.totalorder %s172, %s174
      %p181 = scmp.eq.s32.totalorder %s26, 1
      %p182 = por %p180, %p181
      %p183 = scmp.ne.s32.totalorder %s174, %s175
      %p184 = scmp.eq.s32.totalorder %s26, 0
      %p185 = por %p183, %p184
      %p186 = scmp.ne.s32.totalorder %s174, %s175
      %p187 = scmp.eq.s32.totalorder %s27, 1
      %p188 = por %p186, %p187
      %p190 = scmp.ne.s32.totalorder %s175, %s189
      %p191 = scmp.eq.s32.totalorder %s27, 0
      %p192 = por %p190, %p191
      %s193 = ssub.s32 %s28, %s40
      %s194 = ssub.s32 %s29, %s36
      %s195 = sor.u32 %s193, %s194
      %p196 = scmp.eq.s32.totalorder %s195, 0
      %s198 = sadd.s32 %s197, 1
      %s199 = scalar_select %p196, %s197, %s198
      %p202 = pneg %p196
      %p203 = scmp.eq.s32.totalorder %s21, 1
      %p204 = por %p202, %p203
      %p205 = scmp.ne.s32.totalorder %s197, %s200
      %p206 = scmp.eq.s32.totalorder %s21, 0
      %p207 = por %p205, %p206
      %p208 = scmp.ne.s32.totalorder %s197, %s200
      %p209 = scmp.eq.s32.totalorder %s26, 1
      %p210 = por %p208, %p209
      %p211 = scmp.ne.s32.totalorder %s200, %s201
      %p212 = scmp.eq.s32.totalorder %s26, 0
      %p213 = por %p211, %p212
      %p214 = scmp.ne.s32.totalorder %s200, %s201
      %p215 = scmp.eq.s32.totalorder %s27, 1
      %p216 = por %p214, %p215
      %p218 = scmp.ne.s32.totalorder %s201, %s217
      %p219 = scmp.eq.s32.totalorder %s27, 0
      %p220 = por %p218, %p219
      %p221 = scmp.le.s32.totalorder 1, %s21
      %p222 = scmp.lt.s32.totalorder %s21, 3
      %p223 = pnand %p221, %p222
      %p224 = pneg %p223
      // Predicated region
      $region9: #{tpu_custom_call.1} parent=5 // pred_check
        _
      $region10: #{tpu_custom_call.1} parent=5 // pred_check_branch
        %226 = sbr.rel (%p223) target = $region12
      $region11: #{tpu_custom_call.1} parent=5 // pred_region
        %s227 = ssub.s32 %s21, 1
        // Predicated region
        $region13: #{tpu_custom_call.1} parent=11 // pred_check
          %p228 = pneg %p80
        $region14: #{tpu_custom_call.1} parent=11 // pred_check_branch
          %230 = sbr.rel (%p228) target = $region16
        $region15: #{tpu_custom_call.1} parent=11 // pred_region
          %s232 = ssub.s32 1024, 1024
          %233 = vsyncadd [#allocation6], %s232
          %s234 = sshll.u32 [#allocation5], 4
          %s235 = int_to_ptr.vmem [resolvable:$true] %s234
          %240 = dma.hbm_to_vmem [thread:$0]  %s1, 1024, %s235, [#allocation6], 64, 64, 4
        $region16: #{tpu_custom_call.1} parent=11 // pred_fallthru
          _
        // Predicated region
        $region17: #{tpu_custom_call.1} parent=11 // pred_check
          %p241 = pneg %p101
        $region18: #{tpu_custom_call.1} parent=11 // pred_check_branch
          %243 = sbr.rel (%p241) target = $region20
        $region19: #{tpu_custom_call.1} parent=11 // pred_region
          _
        $region20: #{tpu_custom_call.1} parent=11 // pred_fallthru
          _
        // Predicated region
        $region21: #{tpu_custom_call.1} parent=11 // pred_check
          %p244 = pneg %p122
        $region22: #{tpu_custom_call.1} parent=11 // pred_check_branch
          %246 = sbr.rel (%p244) target = $region24
        $region23: #{tpu_custom_call.1} parent=11 // pred_region
          %s248 = ssub.s32 256, 256
          %249 = vsyncadd [#allocation6], %s248
          %s250 = sshll.u32 [#allocation7], 4
          %s251 = int_to_ptr.vmem [resolvable:$true] %s250
          %256 = dma.hbm_to_vmem [thread:$0]  %s3, 256, %s251, [#allocation6], 128, 128, 8
        $region24: #{tpu_custom_call.1} parent=11 // pred_fallthru
          _
        // Predicated region
        $region25: #{tpu_custom_call.1} parent=11 // pred_check
          %p257 = pneg %p143
        $region26: #{tpu_custom_call.1} parent=11 // pred_check_branch
          %259 = sbr.rel (%p257) target = $region28
        $region27: #{tpu_custom_call.1} parent=11 // pred_region
          _
        $region28: #{tpu_custom_call.1} parent=11 // pred_fallthru
          _
        // Predicated region
        $region29: #{tpu_custom_call.1} parent=11 // pred_check
          %p260 = pneg %p164
        $region30: #{tpu_custom_call.1} parent=11 // pred_check_branch
          %262 = sbr.rel (%p260) target = $region32
        $region31: #{tpu_custom_call.1} parent=11 // pred_region
          %s264 = ssub.s32 1024, 1024
          %265 = vsyncadd [#allocation9], %s264
          %s266 = sshll.u32 [#allocation8], 4
          %s267 = int_to_ptr.vmem [resolvable:$true] %s266
          %272 = dma.hbm_to_vmem [thread:$0]  %s5, 1024, %s267, [#allocation9], 64, 64, 4
        $region32: #{tpu_custom_call.1} parent=11 // pred_fallthru
          _
        // Predicated region
        $region33: #{tpu_custom_call.1} parent=11 // pred_check
          %p273 = pneg %p185
        $region34: #{tpu_custom_call.1} parent=11 // pred_check_branch
          %275 = sbr.rel (%p273) target = $region36
        $region35: #{tpu_custom_call.1} parent=11 // pred_region
          _
        $region36: #{tpu_custom_call.1} parent=11 // pred_fallthru
          _
      $region12: #{tpu_custom_call.1} parent=5 // pred_fallthru
        _
      %p276 = scmp.lt.s32.totalorder %s21, 2
      // Predicated region
      $region37: #{tpu_custom_call.1} parent=5 // pred_check
        %p277 = pneg %p276
      $region38: #{tpu_custom_call.1} parent=5 // pred_check_branch
        %279 = sbr.rel (%p277) target = $region40
      $region39: #{tpu_custom_call.1} parent=5 // pred_region
        // Predicated region
        $region41: #{tpu_custom_call.1} parent=39 // pred_check
          %p280 = pneg %p53
        $region42: #{tpu_custom_call.1} parent=39 // pred_check_branch
          %282 = sbr.rel (%p280) target = $region44
        $region43: #{tpu_custom_call.1} parent=39 // pred_region
          %s283 = sand.u32 %s43, 1
          %s284 = scalar_lea.sflag [#allocation3], %s283
          %s285 = sand.u32 %s43, 1
          %s286 = smul.addr %s285, 56
          %s287 = scalar_lea.vmem [#allocation2], %s286
          %s289 = ssub.s32 896, 896
          %290 = vsyncadd %s284, %s289
          %s291 = smul.addr %s28, 14
          %s292 = smul.addr %s291, 64
          %s293 = scalar_lea.hbm %s0, %s292
          %s294 = sshll.u32 %s287, 4
          %s295 = int_to_ptr.vmem [resolvable:$true] %s294
          %300 = dma.hbm_to_vmem [thread:$0]  %s293, 896, %s295, %s284, 64, 64, 4
        $region44: #{tpu_custom_call.1} parent=39 // pred_fallthru
          _
      $region40: #{tpu_custom_call.1} parent=5 // pred_fallthru
        _
      %p301 = scmp.le.s32.totalorder 1, %s21
      %p302 = scmp.lt.s32.totalorder %s21, 3
      %p303 = pnand %p301, %p302
      %p304 = pneg %p303
      // Predicated region
      $region45: #{tpu_custom_call.1} parent=5 // pred_check
        _
      $region46: #{tpu_custom_call.1} parent=5 // pred_check_branch
        %306 = sbr.rel (%p303) target = $region48
      $region47: #{tpu_custom_call.1} parent=5 // pred_region
        %s307 = ssub.s32 %s21, 1
        %s308 = sand.u32 %s46, 1
        %s309 = scalar_lea.sflag [#allocation3], %s308
        %s310 = sand.u32 %s46, 1
        %s311 = smul.addr %s310, 56
        %s312 = scalar_lea.vmem [#allocation2], %s311
        // Predicated region
        $region49: #{tpu_custom_call.1} parent=47 // pred_check
          %p313 = pneg %p59
        $region50: #{tpu_custom_call.1} parent=47 // pred_check_branch
          %315 = sbr.rel (%p313) target = $region52
        $region51: #{tpu_custom_call.1} parent=47 // pred_region
          %316 = dma.done %s309, 896
        $region52: #{tpu_custom_call.1} parent=47 // pred_fallthru
          _
        // Predicated region
        $region53: #{tpu_custom_call.1} parent=47 // pred_check
          %p317 = pneg %p80
        $region54: #{tpu_custom_call.1} parent=47 // pred_check_branch
          %319 = sbr.rel (%p317) target = $region56
        $region55: #{tpu_custom_call.1} parent=47 // pred_region
          %320 = dma.done [#allocation6], 1024
        $region56: #{tpu_custom_call.1} parent=47 // pred_fallthru
          _
        // Predicated region
        $region57: #{tpu_custom_call.1} parent=47 // pred_check
          %p321 = pneg %p122
        $region58: #{tpu_custom_call.1} parent=47 // pred_check_branch
          %323 = sbr.rel (%p321) target = $region60
        $region59: #{tpu_custom_call.1} parent=47 // pred_region
          %324 = dma.done [#allocation6], 256
        $region60: #{tpu_custom_call.1} parent=47 // pred_fallthru
          _
        // Predicated region
        $region61: #{tpu_custom_call.1} parent=47 // pred_check
          %p325 = pneg %p164
        $region62: #{tpu_custom_call.1} parent=47 // pred_check_branch
          %327 = sbr.rel (%p325) target = $region64
        $region63: #{tpu_custom_call.1} parent=47 // pred_region
          %328 = dma.done [#allocation9], 1024
        $region64: #{tpu_custom_call.1} parent=47 // pred_fallthru
          _
        %s329 = sand.u32 %s46, 1
        %s330 = scalar_lea.sflag [#allocation3], %s329
        %s331 = sand.u32 %s46, 1
        %s332 = smul.addr %s331, 56
        %s333 = scalar_lea.vmem [#allocation2], %s332
        %p334 = pneg %p59
        %p335 = pneg %p56
        %p336 = pneg %p80
        %p337 = pneg %p77
        %p338 = pneg %p101
        %p339 = pneg %p98
        %p340 = pneg %p122
        %p341 = pneg %p119
        %p342 = pneg %p143
        %p343 = pneg %p140
        %p344 = pneg %p164
        %p345 = pneg %p161
        %p346 = pneg %p185
        %p347 = pneg %p182
        %p348 = pneg %p213
        %p349 = pneg %p210
        %s350 = sand.u32 %s200, 1
        %s351 = scalar_lea.sflag [#allocation4], %s350
        %s352 = sand.u32 %s200, 1
        %s353 = smul.addr %s352, 64
        %s354 = scalar_lea.vmem [#allocation10], %s353
        %s355 = smul.u32 8, %s31
        %s357 = smul.u32 %s31, 64
        %v358 = vlaneseq
        %v359 = vand.u32 %v358, 127
        %v360 = vlaneseq
        %v361 = vshrl.u32 %v360, 7
        %v362 = vadd.s32 %v361, 8
        %v363 = vadd.s32 %v361, 16
        %v364 = vadd.s32 %v361, 24
        %v365 = vadd.s32 %v361, 32
        %v366 = vadd.s32 %v361, 40
        %v367 = vadd.s32 %v361, 48
        %v368 = vadd.s32 %v361, 56
        %v369 = vadd.s32 %v361, 64
        %v370 = vadd.s32 %v361, 72
        %v371 = vand.u32 %v361, 7
        %v372 = vand.u32 %v362, 7
        %v373 = vand.u32 %v363, 7
        %v374 = vand.u32 %v364, 7
        %v375 = vand.u32 %v365, 7
        %v376 = vand.u32 %v366, 7
        %v377 = vand.u32 %v367, 7
        %v378 = vand.u32 %v368, 7
        %v379 = vand.u32 %v369, 7
        %v380 = vand.u32 %v370, 7
        %s381 = sadd.s32 %s357, 32
        %s382 = sshra.s32 %s381, 3
        %s383 = sand.u32 %s381, 7
        %s384 = smul.addr %s382, 4
        %s385 = scalar_lea.vmem %s312, %s384 [#allocation2]
        %v386 = vld [vmem:[%s385] sm:$0xf]
        %v387 = vld [vmem:[%s385 + $0x4] sm:$0xf]
        %v388 = vld [vmem:[%s385 + $0x8] sm:$0xf]
        %v389 = vld [vmem:[%s385 + $0xc] sm:$0xf]
        %v390 = vld [vmem:[%s385 + $0x10] sm:$0xf]
        %v391 = vld [vmem:[%s385 + $0x14] sm:$0xf]
        %v392 = vld [vmem:[%s385 + $0x18] sm:$0xf]
        %v393 = vld [vmem:[%s385 + $0x1c] sm:$0xf]
        %v394 = vld [vmem:[%s385 + $0x20] sm:$0xf]
        %v395 = vld [vmem:[%s385 + $0x24] sm:$0xf]
        %vm396 = vcmp.ge.s32.totalorder %v359, 2
        %s397 = sadd.s32 %s357, 24
        %s398 = sshra.s32 %s397, 3
        %s399 = sand.u32 %s397, 7
        %s400 = smul.addr %s398, 4
        %s401 = scalar_lea.vmem %s312, %s400 [#allocation2]
        %v402 = vld [vmem:[%s401] sm:$0xf]
        %v403 = vld [vmem:[%s401 + $0x4] sm:$0xf]
        %v404 = vld [vmem:[%s401 + $0x8] sm:$0xf]
        %v405 = vld [vmem:[%s401 + $0xc] sm:$0xf]
        %v406 = vld [vmem:[%s401 + $0x10] sm:$0xf]
        %v407 = vld [vmem:[%s401 + $0x14] sm:$0xf]
        %v408 = vld [vmem:[%s401 + $0x18] sm:$0xf]
        %v409 = vld [vmem:[%s401 + $0x1c] sm:$0xf]
        %v410 = vld [vmem:[%s401 + $0x20] sm:$0xf]
        %v411 = vld [vmem:[%s401 + $0x24] sm:$0xf]
        %v412 = vsel %vm396, 1, 0
        %vm413 = vcmp.eq.s32.totalorder %v412, 1
        %vm414 = vmpackc.low %vm413, %vm413
        %v415 = vsel %vm414, %v402, %v386
        %v416 = vsel %vm414, %v403, %v387
        %v417 = vsel %vm414, %v404, %v388
        %v418 = vsel %vm414, %v405, %v389
        %v419 = vsel %vm414, %v406, %v390
        %v420 = vsel %vm414, %v407, %v391
        %v421 = vsel %vm414, %v408, %v392
        %v422 = vsel %vm414, %v409, %v393
        %v423 = vsel %vm414, %v410, %v394
        %v424 = vsel %vm414, %v411, %v395
        %vm425 = vcmp.ge.s32.totalorder %v359, 4
        %s426 = sadd.s32 %s357, 16
        %s427 = sshra.s32 %s426, 3
        %s428 = sand.u32 %s426, 7
        %s429 = smul.addr %s427, 4
        %s430 = scalar_lea.vmem %s312, %s429 [#allocation2]
        %v431 = vld [vmem:[%s430] sm:$0xf]
        %v432 = vld [vmem:[%s430 + $0x4] sm:$0xf]
        %v433 = vld [vmem:[%s430 + $0x8] sm:$0xf]
        %v434 = vld [vmem:[%s430 + $0xc] sm:$0xf]
        %v435 = vld [vmem:[%s430 + $0x10] sm:$0xf]
        %v436 = vld [vmem:[%s430 + $0x14] sm:$0xf]
        %v437 = vld [vmem:[%s430 + $0x18] sm:$0xf]
        %v438 = vld [vmem:[%s430 + $0x1c] sm:$0xf]
        %v439 = vld [vmem:[%s430 + $0x20] sm:$0xf]
        %v440 = vld [vmem:[%s430 + $0x24] sm:$0xf]
        %v441 = vsel %vm425, 1, 0
        %vm442 = vcmp.eq.s32.totalorder %v441, 1
        %vm443 = vmpackc.low %vm442, %vm442
        %v444 = vsel %vm443, %v431, %v415
        %v445 = vsel %vm443, %v432, %v416
        %v446 = vsel %vm443, %v433, %v417
        %v447 = vsel %vm443, %v434, %v418
        %v448 = vsel %vm443, %v435, %v419
        %v449 = vsel %vm443, %v436, %v420
        %v450 = vsel %vm443, %v437, %v421
        %v451 = vsel %vm443, %v438, %v422
        %v452 = vsel %vm443, %v439, %v423
        %v453 = vsel %vm443, %v440, %v424
        %vm454 = vcmp.ge.s32.totalorder %v359, 6
        %s455 = sadd.s32 %s357, 8
        %s456 = sshra.s32 %s455, 3
        %s457 = sand.u32 %s455, 7
        %s458 = smul.addr %s456, 4
        %s459 = scalar_lea.vmem %s312, %s458 [#allocation2]
        %v460 = vld [vmem:[%s459] sm:$0xf]
        %v461 = vld [vmem:[%s459 + $0x4] sm:$0xf]
        %v462 = vld [vmem:[%s459 + $0x8] sm:$0xf]
        %v463 = vld [vmem:[%s459 + $0xc] sm:$0xf]
        %v464 = vld [vmem:[%s459 + $0x10] sm:$0xf]
        %v465 = vld [vmem:[%s459 + $0x14] sm:$0xf]
        %v466 = vld [vmem:[%s459 + $0x18] sm:$0xf]
        %v467 = vld [vmem:[%s459 + $0x1c] sm:$0xf]
        %v468 = vld [vmem:[%s459 + $0x20] sm:$0xf]
        %v469 = vld [vmem:[%s459 + $0x24] sm:$0xf]
        %v470 = vsel %vm454, 1, 0
        %vm471 = vcmp.eq.s32.totalorder %v470, 1
        %vm472 = vmpackc.low %vm471, %vm471
        %v473 = vsel %vm472, %v460, %v444
        %v474 = vsel %vm472, %v461, %v445
        %v475 = vsel %vm472, %v462, %v446
        %v476 = vsel %vm472, %v463, %v447
        %v477 = vsel %vm472, %v464, %v448
        %v478 = vsel %vm472, %v465, %v449
        %v479 = vsel %vm472, %v466, %v450
        %v480 = vsel %vm472, %v467, %v451
        %v481 = vsel %vm472, %v468, %v452
        %v482 = vsel %vm472, %v469, %v453
        %vm483 = vcmp.ge.s32.totalorder %v359, 8
        %s484 = sshra.s32 %s357, 3
        %s485 = sand.u32 %s357, 7
        %s486 = smul.addr %s484, 4
        %s487 = scalar_lea.vmem %s312, %s486 [#allocation2]
        %v488 = vld [vmem:[%s487] sm:$0xf]
        %v489 = vld [vmem:[%s487 + $0x4] sm:$0xf]
        %v490 = vld [vmem:[%s487 + $0x8] sm:$0xf]
        %v491 = vld [vmem:[%s487 + $0xc] sm:$0xf]
        %v492 = vld [vmem:[%s487 + $0x10] sm:$0xf]
        %v493 = vld [vmem:[%s487 + $0x14] sm:$0xf]
        %v494 = vld [vmem:[%s487 + $0x18] sm:$0xf]
        %v495 = vld [vmem:[%s487 + $0x1c] sm:$0xf]
        %v496 = vld [vmem:[%s487 + $0x20] sm:$0xf]
        %v497 = vld [vmem:[%s487 + $0x24] sm:$0xf]
        %v498 = vsel %vm483, 1, 0
        %vm499 = vcmp.eq.s32.totalorder %v498, 1
        %vm500 = vmpackc.low %vm499, %vm499
        %v501 = vsel %vm500, %v488, %v473
        %v502 = vsel %vm500, %v489, %v474
        %v503 = vsel %vm500, %v490, %v475
        %v504 = vsel %vm500, %v491, %v476
        %v505 = vsel %vm500, %v492, %v477
        %v506 = vsel %vm500, %v493, %v478
        %v507 = vsel %vm500, %v494, %v479
        %v508 = vsel %vm500, %v495, %v480
        %v509 = vsel %vm500, %v496, %v481
        %v510 = vsel %vm500, %v497, %v482
        %v511 = vld [vmem:[#allocation5] sm:$0xf]
        %v512 = vld [vmem:[#allocation5 + $0x4] sm:$0xf]
        %v513 = vld [vmem:[#allocation5 + $0x8] sm:$0xf]
        %v514 = vld [vmem:[#allocation5 + $0xc] sm:$0xf]
        %v515 = vld [vmem:[#allocation5 + $0x10] sm:$0xf]
        %v516 = vld [vmem:[#allocation5 + $0x14] sm:$0xf]
        %v517 = vld [vmem:[#allocation5 + $0x18] sm:$0xf]
        %v518 = vld [vmem:[#allocation5 + $0x1c] sm:$0xf]
        %v519 = vld [vmem:[#allocation5 + $0x20] sm:$0xf]
        %v520 = vld [vmem:[#allocation5 + $0x24] sm:$0xf]
        %v521 = vld [vmem:[#allocation5 + $0x28] sm:$0xf]
        %v522 = vld [vmem:[#allocation5 + $0x2c] sm:$0xf]
        %v523 = vld [vmem:[#allocation5 + $0x30] sm:$0xf]
        %v524 = vld [vmem:[#allocation5 + $0x34] sm:$0xf]
        %v525 = vld [vmem:[#allocation5 + $0x38] sm:$0xf]
        %v526 = vld [vmem:[#allocation5 + $0x3c] sm:$0xf]
        %v527 = vld [vmem:[%s2] sm:$0x1]
        %v529 = vlaneseq
        %v530 = vshrl.u32 %v529, 7
        %v531 = vsub.s32 0, %v530
        %v532 = vrot.slane %v527, %v531
        %v544 = vunpack.c.l.b16 %v501
        %v545 = vunpack.c.l.b16 %v502
        %v546 = vunpack.c.l.b16 %v503
        %v547 = vunpack.c.l.b16 %v504
        %v548 = vunpack.c.l.b16 %v505
        %v549 = vunpack.c.l.b16 %v506
        %v550 = vunpack.c.l.b16 %v507
        %v551 = vunpack.c.l.b16 %v508
        %v552 = vunpack.c.l.b16 %v509
        %v553 = vunpack.c.l.b16 %v510
        %v554 = vpack.c.b16 %v545, %v544
        %v555 = vpack.c.b16 %v547, %v546
        %v556 = vpack.c.b16 %v549, %v548
        %v557 = vpack.c.b16 %v551, %v550
        %v558 = vpack.c.b16 %v553, %v552
        %v580 = vunpack.c.l.b16 %v511
        %v581 = vunpack.c.l.b16 %v512
        %v582 = vunpack.c.l.b16 %v513
        %v583 = vunpack.c.l.b16 %v514
        %v584 = vunpack.c.l.b16 %v515
        %v585 = vunpack.c.l.b16 %v516
        %v586 = vunpack.c.l.b16 %v517
        %v587 = vunpack.c.l.b16 %v518
        %v588 = vunpack.c.l.b16 %v519
        %v589 = vunpack.c.l.b16 %v520
        %v590 = vunpack.c.l.b16 %v521
        %v591 = vunpack.c.l.b16 %v522
        %v592 = vunpack.c.l.b16 %v523
        %v593 = vunpack.c.l.b16 %v524
        %v594 = vunpack.c.l.b16 %v525
        %v595 = vunpack.c.l.b16 %v526
        %v596 = vpack.c.b16 %v581, %v580
        %v597 = vpack.c.b16 %v583, %v582
        %v598 = vpack.c.b16 %v585, %v584
        %v599 = vpack.c.b16 %v587, %v586
        %v600 = vpack.c.b16 %v589, %v588
        %v601 = vpack.c.b16 %v591, %v590
        %v602 = vpack.c.b16 %v593, %v592
        %v603 = vpack.c.b16 %v595, %v594
        %612 = vmatprep.subr.bf16.mxu0 0
        %613 = vmatpush1.bf16.msra.mxu0 %v596
        %614 = vmatprep.subr.bf16.mxu0 0
        %615 = vmatpush1.bf16.msra.mxu0 %v597
        %616 = vmatprep.subr.bf16.mxu0 0
        %617 = vmatpush1.bf16.msra.mxu0 %v598
        %618 = vmatprep.subr.bf16.mxu0 0
        %619 = vmatpush1.bf16.msra.mxu0 %v599
        %620 = vmatprep.subr.bf16.mxu0 0
        %621 = vmatpush1.bf16.msra.mxu0 %v600
        %622 = vmatprep.subr.bf16.mxu0 0
        %623 = vmatpush1.bf16.msra.mxu0 %v601
        %624 = vmatprep.subr.bf16.mxu0 0
        %625 = vmatpush1.bf16.msra.mxu0 %v602
        %626 = vmatprep.subr.bf16.mxu0 0
        %627 = vmatpush1.bf16.msra.mxu0 %v603
        %628 = vmatprep.subr.bf16.mxu0 0
        %629 = vmatpush1.bf16.msra.mxu0 0
        %630 = vmatprep.subr.bf16.mxu0 0
        %631 = vmatpush1.bf16.msra.mxu0 0
        %632 = vmatprep.subr.bf16.mxu0 0
        %633 = vmatpush1.bf16.msra.mxu0 0
        %634 = vmatprep.subr.bf16.mxu0 0
        %635 = vmatpush1.bf16.msra.mxu0 0
        %636 = vmatprep.subr.bf16.mxu0 0
        %637 = vmatpush1.bf16.msra.mxu0 0
        %638 = vmatprep.subr.bf16.mxu0 0
        %639 = vmatpush1.bf16.msra.mxu0 0
        %640 = vmatprep.subr.bf16.mxu0 0
        %641 = vmatpush1.bf16.msra.mxu0 0
        %642 = vmatprep.subr.bf16.mxu0 0
        %643 = vmatpush1.bf16.msra.mxu0 0
        %644 = vmatprep.mubr.bf16.mxu0 0
        %645 = vmatmul.mubr.bf16.gmra.mrb[0].mxu0 %v554
        %v646 = vpop.f32.mrb[0].mxu0
        %v647 = vadd.f32 %v532, %v646
        %v648 = vpop.f32.mrb[0].mxu0
        %v649 = vpop.f32.mrb[0].mxu0
        %v650 = vadd.f32 %v532, %v649
        %v651 = vpop.f32.mrb[0].mxu0
        %652 = vmatprep.mubr.bf16.mxu0 0
        %653 = vmatmul.mubr.bf16.gmra.mrb[0].mxu0 %v555
        %v654 = vpop.f32.mrb[0].mxu0
        %v655 = vadd.f32 %v532, %v654
        %v656 = vpop.f32.mrb[0].mxu0
        %v657 = vpop.f32.mrb[0].mxu0
        %v658 = vadd.f32 %v532, %v657
        %v659 = vpop.f32.mrb[0].mxu0
        %660 = vmatprep.mubr.bf16.mxu0 0
        %661 = vmatmul.mubr.bf16.gmra.mrb[0].mxu0 %v556
        %v662 = vpop.f32.mrb[0].mxu0
        %v663 = vadd.f32 %v532, %v662
        %v664 = vpop.f32.mrb[0].mxu0
        %v665 = vpop.f32.mrb[0].mxu0
        %v666 = vadd.f32 %v532, %v665
        %v667 = vpop.f32.mrb[0].mxu0
        %668 = vmatprep.mubr.bf16.mxu0 0
        %669 = vmatmul.mubr.bf16.gmra.mrb[0].mxu0 %v557
        %v670 = vpop.f32.mrb[0].mxu0
        %v671 = vadd.f32 %v532, %v670
        %v672 = vpop.f32.mrb[0].mxu0
        %v673 = vpop.f32.mrb[0].mxu0
        %v674 = vadd.f32 %v532, %v673
        %v675 = vpop.f32.mrb[0].mxu0
        %676 = vmatprep.mubr.bf16.mxu0 0
        %677 = vmatmul.mubr.bf16.gmra.mrb[0].mxu0 %v558
        %v678 = vpop.f32.mrb[0].mxu0
        %v679 = vadd.f32 %v532, %v678
        %v680 = vpop.f32.mrb[0].mxu0
        %v681 = vpop.f32.mrb[0].mxu0
        %v682 = vadd.f32 %v532, %v681
        %v683 = vpop.f32.mrb[0].mxu0
        %684 = vdwg.mxu0
        %s685 = ssub.s32 %s357, 8
        %v686 = vstv %s685
        %v687 = vadd.s32 %v361, %v686
        %v688 = vadd.s32 %v362, %v686
        %v689 = vadd.s32 %v363, %v686
        %v690 = vadd.s32 %v364, %v686
        %v691 = vadd.s32 %v365, %v686
        %v692 = vadd.s32 %v366, %v686
        %v693 = vadd.s32 %v367, %v686
        %v694 = vadd.s32 %v368, %v686
        %v695 = vadd.s32 %v369, %v686
        %v696 = vadd.s32 %v370, %v686
        %vm697 = vcmp.ge.s32.totalorder %v687, 0
        %vm698 = vcmp.ge.s32.totalorder %v688, 0
        %vm699 = vcmp.ge.s32.totalorder %v689, 0
        %vm700 = vcmp.ge.s32.totalorder %v690, 0
        %vm701 = vcmp.ge.s32.totalorder %v691, 0
        %vm702 = vcmp.ge.s32.totalorder %v692, 0
        %vm703 = vcmp.ge.s32.totalorder %v693, 0
        %vm704 = vcmp.ge.s32.totalorder %v694, 0
        %vm705 = vcmp.ge.s32.totalorder %v695, 0
        %vm706 = vcmp.ge.s32.totalorder %v696, 0
        %vm707 = vcmp.lt.s32.totalorder %v687, 64
        %vm708 = vcmp.lt.s32.totalorder %v688, 64
        %vm709 = vcmp.lt.s32.totalorder %v689, 64
        %vm710 = vcmp.lt.s32.totalorder %v690, 64
        %vm711 = vcmp.lt.s32.totalorder %v691, 64
        %vm712 = vcmp.lt.s32.totalorder %v692, 64
        %vm713 = vcmp.lt.s32.totalorder %v693, 64
        %vm714 = vcmp.lt.s32.totalorder %v694, 64
        %vm715 = vcmp.lt.s32.totalorder %v695, 64
        %vm716 = vcmp.lt.s32.totalorder %v696, 64
        %vm717 = vmand %vm697, %vm707
        %vm718 = vmand %vm698, %vm708
        %vm719 = vmand %vm699, %vm709
        %vm720 = vmand %vm700, %vm710
        %vm721 = vmand %vm701, %vm711
        %vm722 = vmand %vm702, %vm712
        %vm723 = vmand %vm703, %vm713
        %vm724 = vmand %vm704, %vm714
        %vm725 = vmand %vm705, %vm715
        %vm726 = vmand %vm706, %vm716
        %v727 = vsel %vm717, 1, 0
        %v728 = vsel %vm718, 1, 0
        %v729 = vsel %vm719, 1, 0
        %v730 = vsel %vm720, 1, 0
        %v731 = vsel %vm721, 1, 0
        %v732 = vsel %vm722, 1, 0
        %v733 = vsel %vm723, 1, 0
        %v734 = vsel %vm724, 1, 0
        %v735 = vsel %vm725, 1, 0
        %v736 = vsel %vm726, 1, 0
        %vm737 = vcmp.eq.s32.totalorder %v727, 1
        %vm738 = vcmp.eq.s32.totalorder %v728, 1
        %vm739 = vcmp.eq.s32.totalorder %v729, 1
        %vm740 = vcmp.eq.s32.totalorder %v730, 1
        %vm741 = vcmp.eq.s32.totalorder %v731, 1
        %vm742 = vcmp.eq.s32.totalorder %v732, 1
        %vm743 = vcmp.eq.s32.totalorder %v733, 1
        %vm744 = vcmp.eq.s32.totalorder %v734, 1
        %vm745 = vcmp.eq.s32.totalorder %v735, 1
        %vm746 = vcmp.eq.s32.totalorder %v736, 1
        %v747 = vsel %vm737, %v647, 0.0
        %v748 = vsel %vm738, %v650, 0.0
        %v749 = vsel %vm739, %v655, 0.0
        %v750 = vsel %vm740, %v658, 0.0
        %v751 = vsel %vm741, %v663, 0.0
        %v752 = vsel %vm742, %v666, 0.0
        %v753 = vsel %vm743, %v671, 0.0
        %v754 = vsel %vm744, %v674, 0.0
        %v755 = vsel %vm745, %v679, 0.0
        %v756 = vsel %vm746, %v682, 0.0
        %vm757 = vcmp.lt.s32.totalorder %v371, 7
        %vm758 = vcmp.lt.s32.totalorder %v372, 7
        %vm759 = vcmp.lt.s32.totalorder %v373, 7
        %vm760 = vcmp.lt.s32.totalorder %v374, 7
        %vm761 = vcmp.lt.s32.totalorder %v375, 7
        %vm762 = vcmp.lt.s32.totalorder %v376, 7
        %vm763 = vcmp.lt.s32.totalorder %v377, 7
        %vm764 = vcmp.lt.s32.totalorder %v378, 7
        %vm765 = vcmp.lt.s32.totalorder %v379, 7
        %vm766 = vcmp.lt.s32.totalorder %v380, 7
        %vm777 = vcmask 1046528
        %v778 = vrot.slane %v747, 1
        %v779 = vrot.slane %v748, 1
        %v780 = vsel %vm777, %v778, %v779
        %v781 = vrot.slane %v749, 1
        %v782 = vsel %vm777, %v779, %v781
        %v783 = vrot.slane %v750, 1
        %v784 = vsel %vm777, %v781, %v783
        %v785 = vrot.slane %v751, 1
        %v786 = vsel %vm777, %v783, %v785
        %v787 = vrot.slane %v752, 1
        %v788 = vsel %vm777, %v785, %v787
        %v789 = vrot.slane %v753, 1
        %v790 = vsel %vm777, %v787, %v789
        %v791 = vrot.slane %v754, 1
        %v792 = vsel %vm777, %v789, %v791
        %v793 = vrot.slane %v755, 1
        %v794 = vsel %vm777, %v791, %v793
        %v795 = vrot.slane %v756, 1
        %v796 = vsel %vm777, %v793, %v795
        %v808 = vsel %vm777, %v795, %v778
        %v809 = vsel %vm757, 1, 0
        %v810 = vsel %vm758, 1, 0
        %v811 = vsel %vm759, 1, 0
        %v812 = vsel %vm760, 1, 0
        %v813 = vsel %vm761, 1, 0
        %v814 = vsel %vm762, 1, 0
        %v815 = vsel %vm763, 1, 0
        %v816 = vsel %vm764, 1, 0
        %v817 = vsel %vm765, 1, 0
        %v818 = vsel %vm766, 1, 0
        %vm819 = vcmp.eq.s32.totalorder %v809, 1
        %vm820 = vcmp.eq.s32.totalorder %v810, 1
        %vm821 = vcmp.eq.s32.totalorder %v811, 1
        %vm822 = vcmp.eq.s32.totalorder %v812, 1
        %vm823 = vcmp.eq.s32.totalorder %v813, 1
        %vm824 = vcmp.eq.s32.totalorder %v814, 1
        %vm825 = vcmp.eq.s32.totalorder %v815, 1
        %vm826 = vcmp.eq.s32.totalorder %v816, 1
        %vm827 = vcmp.eq.s32.totalorder %v817, 1
        %vm828 = vcmp.eq.s32.totalorder %v818, 1
        %v829 = vsel %vm819, %v780, 0.0
        %v830 = vsel %vm820, %v782, 0.0
        %v831 = vsel %vm821, %v784, 0.0
        %v832 = vsel %vm822, %v786, 0.0
        %v833 = vsel %vm823, %v788, 0.0
        %v834 = vsel %vm824, %v790, 0.0
        %v835 = vsel %vm825, %v792, 0.0
        %v836 = vsel %vm826, %v794, 0.0
        %v837 = vsel %vm827, %v796, 0.0
        %v838 = vsel %vm828, %v808, 0.0
        %vm839 = vcmp.ge.s32.totalorder %v371, 1
        %vm840 = vcmp.ge.s32.totalorder %v372, 1
        %vm841 = vcmp.ge.s32.totalorder %v373, 1
        %vm842 = vcmp.ge.s32.totalorder %v374, 1
        %vm843 = vcmp.ge.s32.totalorder %v375, 1
        %vm844 = vcmp.ge.s32.totalorder %v376, 1
        %vm845 = vcmp.ge.s32.totalorder %v377, 1
        %vm846 = vcmp.ge.s32.totalorder %v378, 1
        %vm847 = vcmp.ge.s32.totalorder %v379, 1
        %vm848 = vcmp.ge.s32.totalorder %v380, 1
        %v849 = vrot.slane %v756, 7
        %vm851 = vcmask 1040384
        %v852 = vrot.slane %v747, 7
        %v853 = vrot.slane %v748, 7
        %v854 = vsel %vm851, %v852, %v853
        %v855 = vrot.slane %v749, 7
        %v856 = vsel %vm851, %v853, %v855
        %v857 = vrot.slane %v750, 7
        %v858 = vsel %vm851, %v855, %v857
        %v859 = vrot.slane %v751, 7
        %v860 = vsel %vm851, %v857, %v859
        %v861 = vrot.slane %v752, 7
        %v862 = vsel %vm851, %v859, %v861
        %v863 = vrot.slane %v753, 7
        %v864 = vsel %vm851, %v861, %v863
        %v865 = vrot.slane %v754, 7
        %v866 = vsel %vm851, %v863, %v865
        %v867 = vrot.slane %v755, 7
        %v868 = vsel %vm851, %v865, %v867
        %v869 = vsel %vm851, %v867, %v849
        %v880 = vsel %vm851, %v849, %v852
        %v881 = vsel %vm839, 1, 0
        %v882 = vsel %vm840, 1, 0
        %v883 = vsel %vm841, 1, 0
        %v884 = vsel %vm842, 1, 0
        %v885 = vsel %vm843, 1, 0
        %v886 = vsel %vm844, 1, 0
        %v887 = vsel %vm845, 1, 0
        %v888 = vsel %vm846, 1, 0
        %v889 = vsel %vm847, 1, 0
        %v890 = vsel %vm848, 1, 0
        %vm891 = vcmp.eq.s32.totalorder %v881, 1
        %vm892 = vcmp.eq.s32.totalorder %v882, 1
        %vm893 = vcmp.eq.s32.totalorder %v883, 1
        %vm894 = vcmp.eq.s32.totalorder %v884, 1
        %vm895 = vcmp.eq.s32.totalorder %v885, 1
        %vm896 = vcmp.eq.s32.totalorder %v886, 1
        %vm897 = vcmp.eq.s32.totalorder %v887, 1
        %vm898 = vcmp.eq.s32.totalorder %v888, 1
        %vm899 = vcmp.eq.s32.totalorder %v889, 1
        %vm900 = vcmp.eq.s32.totalorder %v890, 1
        %v901 = vsel %vm891, %v880, 0.0
        %v902 = vsel %vm892, %v854, 0.0
        %v903 = vsel %vm893, %v856, 0.0
        %v904 = vsel %vm894, %v858, 0.0
        %v905 = vsel %vm895, %v860, 0.0
        %v906 = vsel %vm896, %v862, 0.0
        %v907 = vsel %vm897, %v864, 0.0
        %v908 = vsel %vm898, %v866, 0.0
        %v909 = vsel %vm899, %v868, 0.0
        %v910 = vsel %vm900, %v869, 0.0
        %v911 = vld [vmem:[#allocation7] sm:$0x1]
        %v912 = vlaneseq
        %v913 = vshrl.u32 %v912, 7
        %v914 = vsub.s32 0, %v913
        %v915 = vrot.slane %v911, %v914
        %v916 = vmul.f32 %v901, %v915
        %v917 = vmul.f32 %v902, %v915
        %v918 = vmul.f32 %v903, %v915
        %v919 = vmul.f32 %v904, %v915
        %v920 = vmul.f32 %v905, %v915
        %v921 = vmul.f32 %v906, %v915
        %v922 = vmul.f32 %v907, %v915
        %v923 = vmul.f32 %v908, %v915
        %v924 = vadd.f32 %v916, 0.0
        %v925 = vadd.f32 %v917, 0.0
        %v926 = vadd.f32 %v918, 0.0
        %v927 = vadd.f32 %v919, 0.0
        %v928 = vadd.f32 %v920, 0.0
        %v929 = vadd.f32 %v921, 0.0
        %v930 = vadd.f32 %v922, 0.0
        %v931 = vadd.f32 %v923, 0.0
        %v932 = vld [vmem:[#allocation7 + $0x1] sm:$0x1]
        %v933 = vlaneseq
        %v934 = vshrl.u32 %v933, 7
        %v935 = vsub.s32 0, %v934
        %v936 = vrot.slane %v932, %v935
        %v937 = vmul.f32 %v747, %v936
        %v938 = vmul.f32 %v748, %v936
        %v939 = vmul.f32 %v749, %v936
        %v940 = vmul.f32 %v750, %v936
        %v941 = vmul.f32 %v751, %v936
        %v942 = vmul.f32 %v752, %v936
        %v943 = vmul.f32 %v753, %v936
        %v944 = vmul.f32 %v754, %v936
        %v945 = vadd.f32 %v924, %v937
        %v946 = vadd.f32 %v925, %v938
        %v947 = vadd.f32 %v926, %v939
        %v948 = vadd.f32 %v927, %v940
        %v949 = vadd.f32 %v928, %v941
        %v950 = vadd.f32 %v929, %v942
        %v951 = vadd.f32 %v930, %v943
        %v952 = vadd.f32 %v931, %v944
        %v953 = vld [vmem:[#allocation7 + $0x2] sm:$0x1]
        %v954 = vlaneseq
        %v955 = vshrl.u32 %v954, 7
        %v956 = vsub.s32 0, %v955
        %v957 = vrot.slane %v953, %v956
        %v958 = vmul.f32 %v829, %v957
        %v959 = vmul.f32 %v830, %v957
        %v960 = vmul.f32 %v831, %v957
        %v961 = vmul.f32 %v832, %v957
        %v962 = vmul.f32 %v833, %v957
        %v963 = vmul.f32 %v834, %v957
        %v964 = vmul.f32 %v835, %v957
        %v965 = vmul.f32 %v836, %v957
        %v966 = vadd.f32 %v945, %v958
        %v967 = vadd.f32 %v946, %v959
        %v968 = vadd.f32 %v947, %v960
        %v969 = vadd.f32 %v948, %v961
        %v970 = vadd.f32 %v949, %v962
        %v971 = vadd.f32 %v950, %v963
        %v972 = vadd.f32 %v951, %v964
        %v973 = vadd.f32 %v952, %v965
        %v974 = vld [vmem:[#allocation7 + $0x3] sm:$0x1]
        %v975 = vlaneseq
        %v976 = vshrl.u32 %v975, 7
        %v977 = vsub.s32 0, %v976
        %v978 = vrot.slane %v974, %v977
        %v979 = vmul.f32 %v902, %v978
        %v980 = vmul.f32 %v903, %v978
        %v981 = vmul.f32 %v904, %v978
        %v982 = vmul.f32 %v905, %v978
        %v983 = vmul.f32 %v906, %v978
        %v984 = vmul.f32 %v907, %v978
        %v985 = vmul.f32 %v908, %v978
        %v986 = vmul.f32 %v909, %v978
        %v987 = vadd.f32 %v966, %v979
        %v988 = vadd.f32 %v967, %v980
        %v989 = vadd.f32 %v968, %v981
        %v990 = vadd.f32 %v969, %v982
        %v991 = vadd.f32 %v970, %v983
        %v992 = vadd.f32 %v971, %v984
        %v993 = vadd.f32 %v972, %v985
        %v994 = vadd.f32 %v973, %v986
        %v995 = vld [vmem:[#allocation7 + $0x4] sm:$0x1]
        %v996 = vlaneseq
        %v997 = vshrl.u32 %v996, 7
        %v998 = vsub.s32 0, %v997
        %v999 = vrot.slane %v995, %v998
        %v1000 = vmul.f32 %v748, %v999
        %v1001 = vmul.f32 %v749, %v999
        %v1002 = vmul.f32 %v750, %v999
        %v1003 = vmul.f32 %v751, %v999
        %v1004 = vmul.f32 %v752, %v999
        %v1005 = vmul.f32 %v753, %v999
        %v1006 = vmul.f32 %v754, %v999
        %v1007 = vmul.f32 %v755, %v999
        %v1008 = vadd.f32 %v987, %v1000
        %v1009 = vadd.f32 %v988, %v1001
        %v1010 = vadd.f32 %v989, %v1002
        %v1011 = vadd.f32 %v990, %v1003
        %v1012 = vadd.f32 %v991, %v1004
        %v1013 = vadd.f32 %v992, %v1005
        %v1014 = vadd.f32 %v993, %v1006
        %v1015 = vadd.f32 %v994, %v1007
        %v1016 = vld [vmem:[#allocation7 + $0x5] sm:$0x1]
        %v1017 = vlaneseq
        %v1018 = vshrl.u32 %v1017, 7
        %v1019 = vsub.s32 0, %v1018
        %v1020 = vrot.slane %v1016, %v1019
        %v1021 = vmul.f32 %v830, %v1020
        %v1022 = vmul.f32 %v831, %v1020
        %v1023 = vmul.f32 %v832, %v1020
        %v1024 = vmul.f32 %v833, %v1020
        %v1025 = vmul.f32 %v834, %v1020
        %v1026 = vmul.f32 %v835, %v1020
        %v1027 = vmul.f32 %v836, %v1020
        %v1028 = vmul.f32 %v837, %v1020
        %v1029 = vadd.f32 %v1008, %v1021
        %v1030 = vadd.f32 %v1009, %v1022
        %v1031 = vadd.f32 %v1010, %v1023
        %v1032 = vadd.f32 %v1011, %v1024
        %v1033 = vadd.f32 %v1012, %v1025
        %v1034 = vadd.f32 %v1013, %v1026
        %v1035 = vadd.f32 %v1014, %v1027
        %v1036 = vadd.f32 %v1015, %v1028
        %v1037 = vld [vmem:[#allocation7 + $0x6] sm:$0x1]
        %v1038 = vlaneseq
        %v1039 = vshrl.u32 %v1038, 7
        %v1040 = vsub.s32 0, %v1039
        %v1041 = vrot.slane %v1037, %v1040
        %v1042 = vmul.f32 %v903, %v1041
        %v1043 = vmul.f32 %v904, %v1041
        %v1044 = vmul.f32 %v905, %v1041
        %v1045 = vmul.f32 %v906, %v1041
        %v1046 = vmul.f32 %v907, %v1041
        %v1047 = vmul.f32 %v908, %v1041
        %v1048 = vmul.f32 %v909, %v1041
        %v1049 = vmul.f32 %v910, %v1041
        %v1050 = vadd.f32 %v1029, %v1042
        %v1051 = vadd.f32 %v1030, %v1043
        %v1052 = vadd.f32 %v1031, %v1044
        %v1053 = vadd.f32 %v1032, %v1045
        %v1054 = vadd.f32 %v1033, %v1046
        %v1055 = vadd.f32 %v1034, %v1047
        %v1056 = vadd.f32 %v1035, %v1048
        %v1057 = vadd.f32 %v1036, %v1049
        %v1058 = vld [vmem:[#allocation7 + $0x7] sm:$0x1]
        %v1059 = vlaneseq
        %v1060 = vshrl.u32 %v1059, 7
        %v1061 = vsub.s32 0, %v1060
        %v1062 = vrot.slane %v1058, %v1061
        %v1063 = vmul.f32 %v749, %v1062
        %v1064 = vmul.f32 %v750, %v1062
        %v1065 = vmul.f32 %v751, %v1062
        %v1066 = vmul.f32 %v752, %v1062
        %v1067 = vmul.f32 %v753, %v1062
        %v1068 = vmul.f32 %v754, %v1062
        %v1069 = vmul.f32 %v755, %v1062
        %v1070 = vmul.f32 %v756, %v1062
        %v1071 = vadd.f32 %v1050, %v1063
        %v1072 = vadd.f32 %v1051, %v1064
        %v1073 = vadd.f32 %v1052, %v1065
        %v1074 = vadd.f32 %v1053, %v1066
        %v1075 = vadd.f32 %v1054, %v1067
        %v1076 = vadd.f32 %v1055, %v1068
        %v1077 = vadd.f32 %v1056, %v1069
        %v1078 = vadd.f32 %v1057, %v1070
        %v1079 = vld [vmem:[#allocation7 + $0x8] sm:$0x1]
        %v1080 = vlaneseq
        %v1081 = vshrl.u32 %v1080, 7
        %v1082 = vsub.s32 0, %v1081
        %v1083 = vrot.slane %v1079, %v1082
        %v1084 = vmul.f32 %v831, %v1083
        %v1085 = vmul.f32 %v832, %v1083
        %v1086 = vmul.f32 %v833, %v1083
        %v1087 = vmul.f32 %v834, %v1083
        %v1088 = vmul.f32 %v835, %v1083
        %v1089 = vmul.f32 %v836, %v1083
        %v1090 = vmul.f32 %v837, %v1083
        %v1091 = vmul.f32 %v838, %v1083
        %v1092 = vadd.f32 %v1071, %v1084
        %v1093 = vadd.f32 %v1072, %v1085
        %v1094 = vadd.f32 %v1073, %v1086
        %v1095 = vadd.f32 %v1074, %v1087
        %v1096 = vadd.f32 %v1075, %v1088
        %v1097 = vadd.f32 %v1076, %v1089
        %v1098 = vadd.f32 %v1077, %v1090
        %v1099 = vadd.f32 %v1078, %v1091
        %v1100 = vld [vmem:[%s4] sm:$0x1]
        %v1102 = vlaneseq
        %v1103 = vshrl.u32 %v1102, 7
        %v1104 = vsub.s32 0, %v1103
        %v1105 = vrot.slane %v1100, %v1104
        %v1107 = vadd.f32 %v1092, %v1105
        %v1108 = vadd.f32 %v1093, %v1105
        %v1109 = vadd.f32 %v1094, %v1105
        %v1110 = vadd.f32 %v1095, %v1105
        %v1111 = vadd.f32 %v1096, %v1105
        %v1112 = vadd.f32 %v1097, %v1105
        %v1113 = vadd.f32 %v1098, %v1105
        %v1114 = vadd.f32 %v1099, %v1105
        %v1115 = vmul.f32 %v1107, 0.5
        %v1116 = vmul.f32 %v1108, 0.5
        %v1117 = vmul.f32 %v1109, 0.5
        %v1118 = vmul.f32 %v1110, 0.5
        %v1119 = vmul.f32 %v1111, 0.5
        %v1120 = vmul.f32 %v1112, 0.5
        %v1121 = vmul.f32 %v1113, 0.5
        %v1122 = vmul.f32 %v1114, 0.5
        %v1123 = vmul.f32 %v1107, 0.044715
        %v1124 = vmul.f32 %v1108, 0.044715
        %v1125 = vmul.f32 %v1109, 0.044715
        %v1126 = vmul.f32 %v1110, 0.044715
        %v1127 = vmul.f32 %v1111, 0.044715
        %v1128 = vmul.f32 %v1112, 0.044715
        %v1129 = vmul.f32 %v1113, 0.044715
        %v1130 = vmul.f32 %v1114, 0.044715
        %v1131 = vmul.f32 %v1123, %v1107
        %v1132 = vmul.f32 %v1124, %v1108
        %v1133 = vmul.f32 %v1125, %v1109
        %v1134 = vmul.f32 %v1126, %v1110
        %v1135 = vmul.f32 %v1127, %v1111
        %v1136 = vmul.f32 %v1128, %v1112
        %v1137 = vmul.f32 %v1129, %v1113
        %v1138 = vmul.f32 %v1130, %v1114
        %v1139 = vmul.f32 %v1131, %v1107
        %v1140 = vmul.f32 %v1132, %v1108
        %v1141 = vmul.f32 %v1133, %v1109
        %v1142 = vmul.f32 %v1134, %v1110
        %v1143 = vmul.f32 %v1135, %v1111
        %v1144 = vmul.f32 %v1136, %v1112
        %v1145 = vmul.f32 %v1137, %v1113
        %v1146 = vmul.f32 %v1138, %v1114
        %v1147 = vadd.f32 %v1107, %v1139
        %v1148 = vadd.f32 %v1108, %v1140
        %v1149 = vadd.f32 %v1109, %v1141
        %v1150 = vadd.f32 %v1110, %v1142
        %v1151 = vadd.f32 %v1111, %v1143
        %v1152 = vadd.f32 %v1112, %v1144
        %v1153 = vadd.f32 %v1113, %v1145
        %v1154 = vadd.f32 %v1114, %v1146
        %v1155 = vmul.f32 %v1147, 0.7978846
        %v1156 = vmul.f32 %v1148, 0.7978846
        %v1157 = vmul.f32 %v1149, 0.7978846
        %v1158 = vmul.f32 %v1150, 0.7978846
        %v1159 = vmul.f32 %v1151, 0.7978846
        %v1160 = vmul.f32 %v1152, 0.7978846
        %v1161 = vmul.f32 %v1153, 0.7978846
        %v1162 = vmul.f32 %v1154, 0.7978846
        %v1163 = vtanh.pop %v1155
        %v1164 = vtanh.pop %v1156
        %v1165 = vtanh.pop %v1157
        %v1166 = vtanh.pop %v1158
        %v1167 = vtanh.pop %v1159
        %v1168 = vtanh.pop %v1160
        %v1169 = vtanh.pop %v1161
        %v1170 = vtanh.pop %v1162
        %v1171 = vadd.f32 %v1163, 1.0
        %v1172 = vadd.f32 %v1164, 1.0
        %v1173 = vadd.f32 %v1165, 1.0
        %v1174 = vadd.f32 %v1166, 1.0
        %v1175 = vadd.f32 %v1167, 1.0
        %v1176 = vadd.f32 %v1168, 1.0
        %v1177 = vadd.f32 %v1169, 1.0
        %v1178 = vadd.f32 %v1170, 1.0
        %v1179 = vmul.f32 %v1115, %v1171
        %v1180 = vmul.f32 %v1116, %v1172
        %v1181 = vmul.f32 %v1117, %v1173
        %v1182 = vmul.f32 %v1118, %v1174
        %v1183 = vmul.f32 %v1119, %v1175
        %v1184 = vmul.f32 %v1120, %v1176
        %v1185 = vmul.f32 %v1121, %v1177
        %v1186 = vmul.f32 %v1122, %v1178
        %vm1187 = vcmp.ge.s32.totalorder %v359, 0
        %vm1188 = vcmp.lt.s32.totalorder %v359, 2
        %vm1189 = vmand %vm1187, %vm1188
        %vm1190 = vcmp.lt.s32.totalorder %v371, 6
        %vm1191 = vcmp.lt.s32.totalorder %v372, 6
        %vm1192 = vcmp.lt.s32.totalorder %v373, 6
        %vm1193 = vcmp.lt.s32.totalorder %v374, 6
        %vm1194 = vcmp.lt.s32.totalorder %v375, 6
        %vm1195 = vcmp.lt.s32.totalorder %v376, 6
        %vm1196 = vcmp.lt.s32.totalorder %v377, 6
        %vm1197 = vcmp.lt.s32.totalorder %v378, 6
        %v1198 = vsel %vm1189, 1, 0
        %vm1199 = vcmp.eq.s32.totalorder %v1198, 1
        %v1200 = vsel %vm1190, 1, 0
        %v1201 = vsel %vm1191, 1, 0
        %v1202 = vsel %vm1192, 1, 0
        %v1203 = vsel %vm1193, 1, 0
        %v1204 = vsel %vm1194, 1, 0
        %v1205 = vsel %vm1195, 1, 0
        %v1206 = vsel %vm1196, 1, 0
        %v1207 = vsel %vm1197, 1, 0
        %vm1208 = vcmp.eq.s32.totalorder %v1200, 1
        %vm1209 = vcmp.eq.s32.totalorder %v1201, 1
        %vm1210 = vcmp.eq.s32.totalorder %v1202, 1
        %vm1211 = vcmp.eq.s32.totalorder %v1203, 1
        %vm1212 = vcmp.eq.s32.totalorder %v1204, 1
        %vm1213 = vcmp.eq.s32.totalorder %v1205, 1
        %vm1214 = vcmp.eq.s32.totalorder %v1206, 1
        %vm1215 = vcmp.eq.s32.totalorder %v1207, 1
        %vm1216 = vmand %vm1199, %vm1208
        %vm1217 = vmand %vm1199, %vm1209
        %vm1218 = vmand %vm1199, %vm1210
        %vm1219 = vmand %vm1199, %vm1211
        %vm1220 = vmand %vm1199, %vm1212
        %vm1221 = vmand %vm1199, %vm1213
        %vm1222 = vmand %vm1199, %vm1214
        %vm1223 = vmand %vm1199, %vm1215
        %vm1232 = vcmask 1045504
        %v1233 = vrot.slane %v1179, 2
        %v1234 = vrot.slane %v1180, 2
        %v1235 = vsel %vm1232, %v1233, %v1234
        %v1236 = vrot.slane %v1181, 2
        %v1237 = vsel %vm1232, %v1234, %v1236
        %v1238 = vrot.slane %v1182, 2
        %v1239 = vsel %vm1232, %v1236, %v1238
        %v1240 = vrot.slane %v1183, 2
        %v1241 = vsel %vm1232, %v1238, %v1240
        %v1242 = vrot.slane %v1184, 2
        %v1243 = vsel %vm1232, %v1240, %v1242
        %v1244 = vrot.slane %v1185, 2
        %v1245 = vsel %vm1232, %v1242, %v1244
        %v1246 = vrot.slane %v1186, 2
        %v1247 = vsel %vm1232, %v1244, %v1246
        %v1257 = vsel %vm1232, %v1246, %v1233
        %v1258 = vsel %vm1216, %v1235, 0.0
        %v1259 = vsel %vm1217, %v1237, 0.0
        %v1260 = vsel %vm1218, %v1239, 0.0
        %v1261 = vsel %vm1219, %v1241, 0.0
        %v1262 = vsel %vm1220, %v1243, 0.0
        %v1263 = vsel %vm1221, %v1245, 0.0
        %v1264 = vsel %vm1222, %v1247, 0.0
        %v1265 = vsel %vm1223, %v1257, 0.0
        %vm1266 = vcmp.lt.s32.totalorder %v359, 4
        %vm1267 = vmand %vm396, %vm1266
        %v1268 = vsel %vm1267, 1, 0
        %vm1269 = vcmp.eq.s32.totalorder %v1268, 1
        %vm1270 = vmand %vm1269, %vm819
        %vm1271 = vmand %vm1269, %vm820
        %vm1272 = vmand %vm1269, %vm821
        %vm1273 = vmand %vm1269, %vm822
        %vm1274 = vmand %vm1269, %vm823
        %vm1275 = vmand %vm1269, %vm824
        %vm1276 = vmand %vm1269, %vm825
        %vm1277 = vmand %vm1269, %vm826
        %v1278 = vrot.slane %v1179, 1
        %v1279 = vrot.slane %v1180, 1
        %v1280 = vsel %vm777, %v1278, %v1279
        %v1281 = vrot.slane %v1181, 1
        %v1282 = vsel %vm777, %v1279, %v1281
        %v1283 = vrot.slane %v1182, 1
        %v1284 = vsel %vm777, %v1281, %v1283
        %v1285 = vrot.slane %v1183, 1
        %v1286 = vsel %vm777, %v1283, %v1285
        %v1287 = vrot.slane %v1184, 1
        %v1288 = vsel %vm777, %v1285, %v1287
        %v1289 = vrot.slane %v1185, 1
        %v1290 = vsel %vm777, %v1287, %v1289
        %v1291 = vrot.slane %v1186, 1
        %v1292 = vsel %vm777, %v1289, %v1291
        %v1302 = vsel %vm777, %v1291, %v1278
        %v1303 = vsel %vm1270, %v1280, %v1258
        %v1304 = vsel %vm1271, %v1282, %v1259
        %v1305 = vsel %vm1272, %v1284, %v1260
        %v1306 = vsel %vm1273, %v1286, %v1261
        %v1307 = vsel %vm1274, %v1288, %v1262
        %v1308 = vsel %vm1275, %v1290, %v1263
        %v1309 = vsel %vm1276, %v1292, %v1264
        %v1310 = vsel %vm1277, %v1302, %v1265
        %vm1311 = vcmp.lt.s32.totalorder %v359, 6
        %vm1312 = vmand %vm425, %vm1311
        %v1313 = vsel %vm1312, 1, 0
        %vm1314 = vcmp.eq.s32.totalorder %v1313, 1
        %v1315 = vsel %vm1314, %v1179, %v1303
        %v1316 = vsel %vm1314, %v1180, %v1304
        %v1317 = vsel %vm1314, %v1181, %v1305
        %v1318 = vsel %vm1314, %v1182, %v1306
        %v1319 = vsel %vm1314, %v1183, %v1307
        %v1320 = vsel %vm1314, %v1184, %v1308
        %v1321 = vsel %vm1314, %v1185, %v1309
        %v1322 = vsel %vm1314, %v1186, %v1310
        %vm1323 = vcmp.lt.s32.totalorder %v359, 8
        %vm1324 = vmand %vm454, %vm1323
        %v1325 = vsel %vm1324, 1, 0
        %vm1326 = vcmp.eq.s32.totalorder %v1325, 1
        %vm1327 = vmand %vm1326, %vm891
        %vm1328 = vmand %vm1326, %vm892
        %vm1329 = vmand %vm1326, %vm893
        %vm1330 = vmand %vm1326, %vm894
        %vm1331 = vmand %vm1326, %vm895
        %vm1332 = vmand %vm1326, %vm896
        %vm1333 = vmand %vm1326, %vm897
        %vm1334 = vmand %vm1326, %vm898
        %v1335 = vrot.slane %v1186, 7
        %v1337 = vrot.slane %v1179, 7
        %v1338 = vrot.slane %v1180, 7
        %v1339 = vsel %vm851, %v1337, %v1338
        %v1340 = vrot.slane %v1181, 7
        %v1341 = vsel %vm851, %v1338, %v1340
        %v1342 = vrot.slane %v1182, 7
        %v1343 = vsel %vm851, %v1340, %v1342
        %v1344 = vrot.slane %v1183, 7
        %v1345 = vsel %vm851, %v1342, %v1344
        %v1346 = vrot.slane %v1184, 7
        %v1347 = vsel %vm851, %v1344, %v1346
        %v1348 = vrot.slane %v1185, 7
        %v1349 = vsel %vm851, %v1346, %v1348
        %v1350 = vsel %vm851, %v1348, %v1335
        %v1359 = vsel %vm851, %v1335, %v1337
        %v1360 = vsel %vm1327, %v1359, %v1315
        %v1361 = vsel %vm1328, %v1339, %v1316
        %v1362 = vsel %vm1329, %v1341, %v1317
        %v1363 = vsel %vm1330, %v1343, %v1318
        %v1364 = vsel %vm1331, %v1345, %v1319
        %v1365 = vsel %vm1332, %v1347, %v1320
        %v1366 = vsel %vm1333, %v1349, %v1321
        %v1367 = vsel %vm1334, %v1350, %v1322
        %vm1368 = vcmp.lt.s32.totalorder %v359, 10
        %vm1369 = vmand %vm483, %vm1368
        %vm1370 = vcmp.ge.s32.totalorder %v371, 2
        %vm1371 = vcmp.ge.s32.totalorder %v372, 2
        %vm1372 = vcmp.ge.s32.totalorder %v373, 2
        %vm1373 = vcmp.ge.s32.totalorder %v374, 2
        %vm1374 = vcmp.ge.s32.totalorder %v375, 2
        %vm1375 = vcmp.ge.s32.totalorder %v376, 2
        %vm1376 = vcmp.ge.s32.totalorder %v377, 2
        %vm1377 = vcmp.ge.s32.totalorder %v378, 2
        %v1378 = vsel %vm1369, 1, 0
        %vm1379 = vcmp.eq.s32.totalorder %v1378, 1
        %v1380 = vsel %vm1370, 1, 0
        %v1381 = vsel %vm1371, 1, 0
        %v1382 = vsel %vm1372, 1, 0
        %v1383 = vsel %vm1373, 1, 0
        %v1384 = vsel %vm1374, 1, 0
        %v1385 = vsel %vm1375, 1, 0
        %v1386 = vsel %vm1376, 1, 0
        %v1387 = vsel %vm1377, 1, 0
        %vm1388 = vcmp.eq.s32.totalorder %v1380, 1
        %vm1389 = vcmp.eq.s32.totalorder %v1381, 1
        %vm1390 = vcmp.eq.s32.totalorder %v1382, 1
        %vm1391 = vcmp.eq.s32.totalorder %v1383, 1
        %vm1392 = vcmp.eq.s32.totalorder %v1384, 1
        %vm1393 = vcmp.eq.s32.totalorder %v1385, 1
        %vm1394 = vcmp.eq.s32.totalorder %v1386, 1
        %vm1395 = vcmp.eq.s32.totalorder %v1387, 1
        %vm1396 = vmand %vm1379, %vm1388
        %vm1397 = vmand %vm1379, %vm1389
        %vm1398 = vmand %vm1379, %vm1390
        %vm1399 = vmand %vm1379, %vm1391
        %vm1400 = vmand %vm1379, %vm1392
        %vm1401 = vmand %vm1379, %vm1393
        %vm1402 = vmand %vm1379, %vm1394
        %vm1403 = vmand %vm1379, %vm1395
        %v1404 = vrot.slane %v1186, 6
        %vm1406 = vcmask 1041408
        %v1407 = vrot.slane %v1179, 6
        %v1408 = vrot.slane %v1180, 6
        %v1409 = vsel %vm1406, %v1407, %v1408
        %v1410 = vrot.slane %v1181, 6
        %v1411 = vsel %vm1406, %v1408, %v1410
        %v1412 = vrot.slane %v1182, 6
        %v1413 = vsel %vm1406, %v1410, %v1412
        %v1414 = vrot.slane %v1183, 6
        %v1415 = vsel %vm1406, %v1412, %v1414
        %v1416 = vrot.slane %v1184, 6
        %v1417 = vsel %vm1406, %v1414, %v1416
        %v1418 = vrot.slane %v1185, 6
        %v1419 = vsel %vm1406, %v1416, %v1418
        %v1420 = vsel %vm1406, %v1418, %v1404
        %v1429 = vsel %vm1406, %v1404, %v1407
        %v1430 = vsel %vm1396, %v1429, %v1360
        %v1431 = vsel %vm1397, %v1409, %v1361
        %v1432 = vsel %vm1398, %v1411, %v1362
        %v1433 = vsel %vm1399, %v1413, %v1363
        %v1434 = vsel %vm1400, %v1415, %v1364
        %v1435 = vsel %vm1401, %v1417, %v1365
        %v1436 = vsel %vm1402, %v1419, %v1366
        %v1437 = vsel %vm1403, %v1420, %v1367
        %v1438 = vpack.c.bf16 %v1431, %v1430
        %v1439 = vpack.c.bf16 %v1433, %v1432
        %v1440 = vpack.c.bf16 %v1435, %v1434
        %v1441 = vpack.c.bf16 %v1437, %v1436
        %v1442 = vld [vmem:[#allocation8] sm:$0xf]
        %v1443 = vld [vmem:[#allocation8 + $0x4] sm:$0xf]
        %v1444 = vld [vmem:[#allocation8 + $0x8] sm:$0xf]
        %v1445 = vld [vmem:[#allocation8 + $0xc] sm:$0xf]
        %v1446 = vld [vmem:[#allocation8 + $0x10] sm:$0xf]
        %v1447 = vld [vmem:[#allocation8 + $0x14] sm:$0xf]
        %v1448 = vld [vmem:[#allocation8 + $0x18] sm:$0xf]
        %v1449 = vld [vmem:[#allocation8 + $0x1c] sm:$0xf]
        %v1450 = vld [vmem:[#allocation8 + $0x20] sm:$0xf]
        %v1451 = vld [vmem:[#allocation8 + $0x24] sm:$0xf]
        %v1452 = vld [vmem:[#allocation8 + $0x28] sm:$0xf]
        %v1453 = vld [vmem:[#allocation8 + $0x2c] sm:$0xf]
        %v1454 = vld [vmem:[#allocation8 + $0x30] sm:$0xf]
        %v1455 = vld [vmem:[#allocation8 + $0x34] sm:$0xf]
        %v1456 = vld [vmem:[#allocation8 + $0x38] sm:$0xf]
        %v1457 = vld [vmem:[#allocation8 + $0x3c] sm:$0xf]
        %v1458 = vld [vmem:[%s6] sm:$0x1]
        %v1460 = vlaneseq
        %v1461 = vshrl.u32 %v1460, 7
        %v1462 = vsub.s32 0, %v1461
        %v1463 = vrot.slane %v1458, %v1462
        %v1481 = vunpack.c.l.b16 %v1442
        %v1482 = vunpack.c.l.b16 %v1443
        %v1483 = vunpack.c.l.b16 %v1444
        %v1484 = vunpack.c.l.b16 %v1445
        %v1485 = vunpack.c.l.b16 %v1446
        %v1486 = vunpack.c.l.b16 %v1447
        %v1487 = vunpack.c.l.b16 %v1448
        %v1488 = vunpack.c.l.b16 %v1449
        %v1489 = vunpack.c.l.b16 %v1450
        %v1490 = vunpack.c.l.b16 %v1451
        %v1491 = vunpack.c.l.b16 %v1452
        %v1492 = vunpack.c.l.b16 %v1453
        %v1493 = vunpack.c.l.b16 %v1454
        %v1494 = vunpack.c.l.b16 %v1455
        %v1495 = vunpack.c.l.b16 %v1456
        %v1496 = vunpack.c.l.b16 %v1457
        %v1497 = vpack.c.b16 %v1482, %v1481
        %v1498 = vpack.c.b16 %v1484, %v1483
        %v1499 = vpack.c.b16 %v1486, %v1485
        %v1500 = vpack.c.b16 %v1488, %v1487
        %v1501 = vpack.c.b16 %v1490, %v1489
        %v1502 = vpack.c.b16 %v1492, %v1491
        %v1503 = vpack.c.b16 %v1494, %v1493
        %v1504 = vpack.c.b16 %v1496, %v1495
        %1513 = vmatprep.subr.bf16.mxu0 0
        %1514 = vmatpush1.bf16.msra.mxu0 %v1497
        %1515 = vmatprep.subr.bf16.mxu0 0
        %1516 = vmatpush1.bf16.msra.mxu0 %v1498
        %1517 = vmatprep.subr.bf16.mxu0 0
        %1518 = vmatpush1.bf16.msra.mxu0 %v1499
        %1519 = vmatprep.subr.bf16.mxu0 0
        %1520 = vmatpush1.bf16.msra.mxu0 %v1500
        %1521 = vmatprep.subr.bf16.mxu0 0
        %1522 = vmatpush1.bf16.msra.mxu0 %v1501
        %1523 = vmatprep.subr.bf16.mxu0 0
        %1524 = vmatpush1.bf16.msra.mxu0 %v1502
        %1525 = vmatprep.subr.bf16.mxu0 0
        %1526 = vmatpush1.bf16.msra.mxu0 %v1503
        %1527 = vmatprep.subr.bf16.mxu0 0
        %1528 = vmatpush1.bf16.msra.mxu0 %v1504
        %1529 = vmatprep.subr.bf16.mxu0 0
        %1530 = vmatpush1.bf16.msra.mxu0 0
        %1531 = vmatprep.subr.bf16.mxu0 0
        %1532 = vmatpush1.bf16.msra.mxu0 0
        %1533 = vmatprep.subr.bf16.mxu0 0
        %1534 = vmatpush1.bf16.msra.mxu0 0
        %1535 = vmatprep.subr.bf16.mxu0 0
        %1536 = vmatpush1.bf16.msra.mxu0 0
        %1537 = vmatprep.subr.bf16.mxu0 0
        %1538 = vmatpush1.bf16.msra.mxu0 0
        %1539 = vmatprep.subr.bf16.mxu0 0
        %1540 = vmatpush1.bf16.msra.mxu0 0
        %1541 = vmatprep.subr.bf16.mxu0 0
        %1542 = vmatpush1.bf16.msra.mxu0 0
        %1543 = vmatprep.subr.bf16.mxu0 0
        %1544 = vmatpush1.bf16.msra.mxu0 0
        %1545 = vmatprep.mubr.bf16.mxu0 0
        %1546 = vmatmul.mubr.bf16.gmra.mrb[0].mxu0 %v1438
        %v1547 = vpop.f32.mrb[0].mxu0
        %v1548 = vadd.f32 %v1463, %v1547
        %v1549 = vpop.f32.mrb[0].mxu0
        %v1550 = vpop.f32.mrb[0].mxu0
        %v1551 = vadd.f32 %v1463, %v1550
        %v1552 = vpop.f32.mrb[0].mxu0
        %1553 = vmatprep.mubr.bf16.mxu0 0
        %1554 = vmatmul.mubr.bf16.gmra.mrb[0].mxu0 %v1439
        %v1555 = vpop.f32.mrb[0].mxu0
        %v1556 = vadd.f32 %v1463, %v1555
        %v1557 = vpop.f32.mrb[0].mxu0
        %v1558 = vpop.f32.mrb[0].mxu0
        %v1559 = vadd.f32 %v1463, %v1558
        %v1560 = vpop.f32.mrb[0].mxu0
        %1561 = vmatprep.mubr.bf16.mxu0 0
        %1562 = vmatmul.mubr.bf16.gmra.mrb[0].mxu0 %v1440
        %v1563 = vpop.f32.mrb[0].mxu0
        %v1564 = vadd.f32 %v1463, %v1563
        %v1565 = vpop.f32.mrb[0].mxu0
        %v1566 = vpop.f32.mrb[0].mxu0
        %v1567 = vadd.f32 %v1463, %v1566
        %v1568 = vpop.f32.mrb[0].mxu0
        %1569 = vmatprep.mubr.bf16.mxu0 0
        %1570 = vmatmul.mubr.bf16.gmra.mrb[0].mxu0 %v1441
        %v1571 = vpop.f32.mrb[0].mxu0
        %v1572 = vadd.f32 %v1463, %v1571
        %v1573 = vpop.f32.mrb[0].mxu0
        %v1574 = vpop.f32.mrb[0].mxu0
        %v1575 = vadd.f32 %v1463, %v1574
        %v1576 = vpop.f32.mrb[0].mxu0
        %1577 = vdwg.mxu0
        %1578 = vst [vmem:[%s354] sm:$0xff] %v1548
        %1579 = vst [vmem:[%s354 + $0x8] sm:$0xff] %v1551
        %1580 = vst [vmem:[%s354 + $0x10] sm:$0xff] %v1556
        %1581 = vst [vmem:[%s354 + $0x18] sm:$0xff] %v1559
        %1582 = vst [vmem:[%s354 + $0x20] sm:$0xff] %v1564
        %1583 = vst [vmem:[%s354 + $0x28] sm:$0xff] %v1567
        %1584 = vst [vmem:[%s354 + $0x30] sm:$0xff] %v1572
        %1585 = vst [vmem:[%s354 + $0x38] sm:$0xff] %v1575
        %s1586 = sand.u32 %s200, 1
        %s1587 = scalar_lea.sflag [#allocation4], %s1586
        %s1588 = sand.u32 %s200, 1
        %s1589 = smul.addr %s1588, 64
        %s1590 = scalar_lea.vmem [#allocation10], %s1589
        // Predicated region
        $region65: #{tpu_custom_call.1} parent=47 // pred_check
          %p1591 = pneg %p210
        $region66: #{tpu_custom_call.1} parent=47 // pred_check_branch
          %1593 = sbr.rel (%p1591) target = $region68
        $region67: #{tpu_custom_call.1} parent=47 // pred_region
          %s1594 = smul.u32 8, %s31
          %s1596 = ssub.s32 1024, 1024
          %1597 = vsyncadd %s1587, %s1596
          %s1598 = smul.addr %s30, 8
          %s1599 = sadd.s32 %s1594, %s1598
          %s1600 = smul.addr %s1599, 128
          %s1601 = scalar_lea.hbm %s7, %s1600
          %s1602 = sshll.u32 %s1590, 4
          %s1603 = int_to_ptr.vmem [resolvable:$true] %s1602
          %1608 = dma.vmem_to_hbm [thread:$0]  %s1603, 1024, %s1601, %s1587, 128, 128, 8
        $region68: #{tpu_custom_call.1} parent=47 // pred_fallthru
          _
      $region48: #{tpu_custom_call.1} parent=5 // pred_fallthru
        _
      %p1609 = scmp.le.s32.totalorder 2, %s21
      // Predicated region
      $region69: #{tpu_custom_call.1} parent=5 // pred_check
        %p1610 = pneg %p1609
      $region70: #{tpu_custom_call.1} parent=5 // pred_check_branch
        %1612 = sbr.rel (%p1610) target = $region72
      $region71: #{tpu_custom_call.1} parent=5 // pred_region
        %s1613 = ssub.s32 %s21, 2
        // Predicated region
        $region73: #{tpu_custom_call.1} parent=71 // pred_check
          %p1614 = pneg %p216
        $region74: #{tpu_custom_call.1} parent=71 // pred_check_branch
          %1616 = sbr.rel (%p1614) target = $region76
        $region75: #{tpu_custom_call.1} parent=71 // pred_region
          %s1617 = sand.u32 %s201, 1
          %s1618 = scalar_lea.sflag [#allocation4], %s1617
          %s1619 = sand.u32 %s201, 1
          %s1620 = smul.addr %s1619, 64
          %s1621 = scalar_lea.vmem [#allocation10], %s1620
          %1622 = dma.done %s1618, 1024
        $region76: #{tpu_custom_call.1} parent=71 // pred_fallthru
          _
      $region72: #{tpu_custom_call.1} parent=5 // pred_fallthru
        _
    $region6: #{tpu_custom_call.1} parent=1 // loop_footer
      %s25 = sadd.s32 1, %s21
    $region7: #{tpu_custom_call.1} parent=1 // loop_footer_branch
      %20 = sbr.rel target = $region3
    $region8: #{tpu_custom_call.1} parent=1 // loop_exit
      _
    %1623 = vsyncpa [#allocation3], 1
    %s1624 = scalar_lea.sflag [#allocation3], 1
    %1625 = vsyncpa %s1624, 1
    %1626 = vsyncpa [#allocation6], 1
    %1627 = vsyncpa [#allocation9], 1
    %1628 = vsyncpa [#allocation4], 1
    %s1629 = scalar_lea.sflag [#allocation4], 1
    %1630 = vsyncpa %s1629, 1

</llo_original>
